<compile_context>
chip_gen: v6e
topology: v6e:2x2x1
jax: 0.10.0
libtpu: 0.0.40
codegen_flags: <defaults>
</compile_context>

<pallas_src>
import jax
import jax.numpy as jnp
from jax import lax
from jax.experimental import pallas as pl
from jax.experimental.pallas import tpu as pltpu


def _round_up(x: int, m: int) -> int:
    return ((x + m - 1) // m) * m


def _slab_layout(embedding_size: int, n_layers: int, h_size: int, dtype):
    """Row offsets of each parameter inside the packed [R, H_pad] slab."""
    two_e = 2 * embedding_size
    h_pad = _round_up(max(h_size, 1), 128)          # lane-filling hidden width
    # Keep every segment aligned to the native sublane tile of the slab dtype
    # (8 rows for f32, 16 for bf16) so in-kernel static slices stay cheap.
    align = max(8, 32 // jnp.dtype(dtype).itemsize)

    segs = [("w0", two_e), ("b0", 1)]
    for i in range(1, n_layers - 1):
        segs += [(f"w{i}", h_pad), (f"b{i}", 1)]
    segs += [("w_last_t", 1), ("b_last", 1)]

    offsets, row = {}, 0
    for name, height in segs:
        offsets[name] = row
        row += _round_up(height, align)
    return offsets, _round_up(row, align), h_pad


def pack_params(params, embedding_size, n_layers, h_size, dtype=jnp.float32):
    """Pack all FCPrediction parameters into one [R, H_pad] slab (one DMA).

    Hidden width is zero-padded to H_pad (multiple of 128); padded units stay
    exactly zero through bias+ReLU and contribute nothing to the output.
    The slab is emitted directly in the compute dtype (f32 or bf16).
    """
    two_e = 2 * embedding_size
    offsets, total_rows, h_pad = _slab_layout(embedding_size, n_layers, h_size, dtype)
    slab = jnp.zeros((total_rows, h_pad), dtype)

    def put(s, name, rows, val):
        o = offsets[name]
        return s.at[o:o + rows, :h_size].set(val.astype(dtype))

    slab = put(slab, "w0", two_e, params["w0"])                       # (2E, H)
    slab = put(slab, "b0", 1, params["b0"].reshape(1, h_size))
    for i in range(1, n_layers - 1):
        slab = put(slab, f"w{i}", h_size, params[f"w{i}"])            # (H, H)
        slab = put(slab, f"b{i}", 1, params[f"b{i}"].reshape(1, h_size))
    # Last layer Linear(H -> 1): weight stored transposed as a (1, H) row.
    slab = put(slab, "w_last_t", 1, params[f"w{n_layers - 1}"].reshape(1, h_size))
    slab = slab.at[offsets["b_last"], 0].set(
        params[f"b{n_layers - 1}"].reshape(()).astype(dtype))
    return slab, offsets, h_pad


def _make_mlp_kernel(two_e, h_pad, n_layers, offsets, compute_dtype):
    def dot_f32(a, b):
        return jnp.dot(a, b, preferred_element_type=jnp.float32)

    def kernel(x_ref, slab_ref, out_ref):
        x = x_ref[...]                                           # (TILE_B, 2E)

        # Layer 0: fused concat already done wrapper-side -> Linear(2E->H)+ReLU.
        w0 = slab_ref[offsets["w0"]:offsets["w0"] + two_e, :]
        b0 = slab_ref[offsets["b0"]:offsets["b0"] + 1, :].astype(jnp.float32)
        h = jnp.maximum(dot_f32(x, w0) + b0, 0.0)                # f32 (TILE_B, H_pad)

        # Hidden layers 1 .. n_layers-2: Linear(H->H) + ReLU.
        for i in range(1, n_layers - 1):
            w = slab_ref[offsets[f"w{i}"]:offsets[f"w{i}"] + h_pad, :]
            b = slab_ref[offsets[f"b{i}"]:offsets[f"b{i}"] + 1, :].astype(jnp.float32)
            h = jnp.maximum(dot_f32(h.astype(compute_dtype), w) + b, 0.0)

        # Last layer Linear(H->1), no ReLU.  (1,H) contracted with (TILE_B,H)
        # over H -> (1, TILE_B): lane-dense result, no wasted N=1 MXU column.
        w_last = slab_ref[offsets["w_last_t"]:offsets["w_last_t"] + 1, :]
        b_last = slab_ref[offsets["b_last"]:offsets["b_last"] + 1, 0:1].astype(jnp.float32)
        r = lax.dot_general(
            w_last, h.astype(compute_dtype),
            dimension_numbers=(((1,), (1,)), ((), ())),
            preferred_element_type=jnp.float32)                  # (1, TILE_B)
        out_ref[...] = (r + b_last).astype(out_ref.dtype)

    return kernel


def _vmem_limit_bytes(requested: int) -> int:
    """Generation-aware VMEM budget (≈60% of physical; conservative default)."""
    try:
        cap = getattr(pltpu.get_tpu_info(), "vmem_capacity_bytes", None)
    except Exception:
        cap = None
    if not cap:
        cap = 64 * 1024 * 1024          # conservative: v7x per-TensorCore VMEM
    ceiling = int(cap * 0.6)            # ~38 MiB on v7x, ~76 MiB on v5e/v6e
    return int(min(ceiling, max(8 * 1024 * 1024, requested)))


def two_step_fc_prediction(embeddings_1, embeddings_2, slab, offsets, *,
                           embedding_size, n_layers, h_size, tile_b=2048):
    """Forward pass of TwoStepFCPrediction given the two sentence embeddings."""
    assert n_layers >= 2
    B, E = embeddings_1.shape
    assert E == embedding_size and embeddings_2.shape == (B, E)
    two_e = 2 * E
    h_pad = slab.shape[1]
    assert h_pad == _round_up(max(h_size, 1), 128)
    compute_dtype = slab.dtype
    item = jnp.dtype(compute_dtype).itemsize

    # --- batch tiling ------------------------------------------------------
    assert tile_b % 128 == 0 and tile_b >= 128
    if B >= 256:
        # Large tiles to amortize per-step overhead, but at least 2 grid steps
        # so v7x's two TensorCores both get work on the "parallel" batch axis.
        n_steps = max(2, pl.cdiv(B, tile_b))
        TILE_B = _round_up(pl.cdiv(B, n_steps), 128)
    else:
        TILE_B = B                      # single small block (== full array dims)
    B_pad = _round_up(B, TILE_B)
    grid = (B_pad // TILE_B,)

    # Contiguous (B, 2E) input in the compute dtype (bf16 halves the dominant
    # HBM stream when the slab is bf16).  Padded batch rows are zero so every
    # (1, TILE_B) output store is a full, unmasked lane-dense block.
    x = jnp.concatenate([embeddings_1, embeddings_2], axis=-1).astype(compute_dtype)
    if B_pad != B:
        x = jnp.pad(x, ((0, B_pad - B), (0, 0)))

    kernel = _make_mlp_kernel(two_e, h_pad, n_layers, offsets, compute_dtype)

    flops = 2 * B_pad * (two_e * h_pad
                         + max(n_layers - 2, 0) * h_pad * h_pad + h_pad)
    bytes_accessed = item * (B_pad * two_e + slab.size) + 4 * B_pad
    cost = pl.CostEstimate(flops=flops, transcendentals=0,
                           bytes_accessed=bytes_accessed)

    vmem_est = (2 * TILE_B * two_e * item        # double-buffered input tiles
                + 2 * slab.size * item           # weight slab (<= 2 buffers)
                + 2 * TILE_B * 4                 # output tiles
                + 4 * TILE_B * h_pad * 4)        # f32 activation working set
    vmem_limit = _vmem_limit_bytes(2 * vmem_est)

    def call(slab_pipeline_mode):
        slab_kwargs = ({} if slab_pipeline_mode is None
                       else {"pipeline_mode": slab_pipeline_mode})
        out_row = pl.pallas_call(
            kernel,
            out_shape=jax.ShapeDtypeStruct((1, B_pad), jnp.float32),
            grid=grid,
            in_specs=[
                pl.BlockSpec((TILE_B, two_e), lambda i: (i, 0)),   # streamed batch tile
                pl.BlockSpec(slab.shape, lambda i: (0, 0),         # resident weights
                             **slab_kwargs),
            ],
            out_specs=pl.BlockSpec((1, TILE_B), lambda i: (0, i)),  # lane-dense row
            compiler_params=pltpu.CompilerParams(
                dimension_semantics=("parallel",),
                vmem_limit_bytes=vmem_limit),
            cost_estimate=cost,
        )(x, slab)
        return jax.block_until_ready(out_row)

    try:
        # The slab's index_map is constant -> a second pipeline buffer is waste.
        out_row = call(pl.Buffered(1))
    except Exception:
        # Fallback if this jax build rejects pipeline_mode on BlockSpec.
        out_row = call(None)

    return out_row[0, :B].reshape(B, 1)


def init_params(key, embedding_size, n_layers, h_size, dtype=jnp.float32):
    """Deterministic synthetic weights matching FCPrediction's layer shapes."""
    params = {}
    keys = jax.random.split(key, 2 * n_layers)
    scale = 0.05
    in_dim = 2 * embedding_size
    for i in range(n_layers):
        out_dim = 1 if i == n_layers - 1 else h_size
        params[f"w{i}"] = scale * jax.random.normal(keys[2 * i], (in_dim, out_dim), dtype)
        params[f"b{i}"] = scale * jax.random.normal(keys[2 * i + 1], (1, out_dim), dtype)
        in_dim = h_size
    return params


def reference_forward(e1, e2, params, n_layers):
    """Pure-JAX reference mirroring the PyTorch forward (for correctness)."""
    h = jnp.concatenate([e1, e2], axis=-1)
    for i in range(n_layers):
        h = h @ params[f"w{i}"] + params[f"b{i}"]
        if i != n_layers - 1:
            h = jnp.maximum(h, 0.0)
    return h


if __name__ == "__main__":
    # Small, module-consistent shapes.  B=1024 with default tile_b gives a
    # 2-step batch grid of 512-row tiles (both v7x TensorCores busy, full
    # unmasked lane-dense output stores).  h_size=32 is zero-padded to 128
    # internally for lane-filling compute.
    B = 1024
    embedding_size = 64          # 2E = 128: one full-lane contraction for layer 0
    n_layers = 3
    h_size = 32

    key = jax.random.PRNGKey(0)
    k_e1, k_e2, k_p = jax.random.split(key, 3)

    # The SentenceTransformer encoder is external: its sentence embeddings are
    # the kernel inputs.
    embeddings_1 = jax.random.normal(k_e1, (B, embedding_size), jnp.float32)
    embeddings_2 = jax.random.normal(k_e2, (B, embedding_size), jnp.float32)
    params = init_params(k_p, embedding_size, n_layers, h_size)
    ref = reference_forward(embeddings_1, embeddings_2, params, n_layers)

    # --- f32 path: exactness check ----------------------------------------
    slab_f32, off_f32, _ = pack_params(params, embedding_size, n_layers, h_size,
                                       dtype=jnp.float32)
    pred_f32 = two_step_fc_prediction(
        embeddings_1, embeddings_2, jax.block_until_ready(slab_f32), off_f32,
        embedding_size=embedding_size, n_layers=n_layers, h_size=h_size)
    pred_f32 = jax.block_until_ready(pred_f32)
    assert pred_f32.shape == (B, 1)
    assert jnp.allclose(pred_f32, ref, atol=1e-5, rtol=1e-4)

    # --- bf16 production path: native MXU mode, f32 accumulation ------------
    slab_bf16, off_bf16, _ = pack_params(params, embedding_size, n_layers, h_size,
                                         dtype=jnp.bfloat16)
    pred_bf16 = two_step_fc_prediction(
        embeddings_1, embeddings_2, jax.block_until_ready(slab_bf16), off_bf16,
        embedding_size=embedding_size, n_layers=n_layers, h_size=h_size)
    pred_bf16 = jax.block_until_ready(pred_bf16)
    assert pred_bf16.shape == (B, 1)
    assert jnp.allclose(pred_bf16, ref, atol=5e-2, rtol=5e-2)  # bf16 rounding tolerance

    print("KERNEL_OK")
</pallas_src>

<mosaic_0001>
module attributes {stable_mosaic.version = 11 : i64} {
  func.func @kernel(%arg0: i32, %arg1: memref<512x128xf32, #tpu.memory_space<vmem>>, %arg2: memref<288x128xf32, #tpu.memory_space<vmem>>, %arg3: memref<1x512xf32, #tpu.memory_space<vmem>>) attributes {dimension_semantics = [#tpu.dimension_semantics<parallel>], iteration_bounds = array<i64: 2>, scalar_prefetch = 0 : i64, scratch_operands = 0 : i64, tpu.core_type = #tpu.core_type<tc>, window_params = [{transform_indices = @transform_0, window_bounds = array<i64: 512, 128>}, {pipeline_mode = #tpu.pipeline_mode<synchronous>, transform_indices = @transform_1, window_bounds = array<i64: 288, 128>}, {transform_indices = @transform_2, window_bounds = array<i64: 1, 512>}]} {
    %c0 = arith.constant 0 : index
    %c0_0 = arith.constant 0 : index
    %0 = vector.load %arg1[%c0, %c0_0] : memref<512x128xf32, #tpu.memory_space<vmem>>, vector<512x128xf32>
    %c0_1 = arith.constant 0 : index
    %c0_2 = arith.constant 0 : index
    %1 = vector.load %arg2[%c0_1, %c0_2] : memref<288x128xf32, #tpu.memory_space<vmem>>, vector<128x128xf32>
    %c128 = arith.constant 128 : index
    %c0_3 = arith.constant 0 : index
    %2 = vector.load %arg2[%c128, %c0_3] : memref<288x128xf32, #tpu.memory_space<vmem>>, vector<1x128xf32>
    %cst = arith.constant dense<0.000000e+00> : vector<512x128xf32>
    %3 = tpu.matmul %0, %1, %cst {dimension_numbers = #tpu.dot_dimension_numbers<[1], [0], [0], [1], [0, 0, 1, 1], [], []>} : vector<512x128xf32>, vector<128x128xf32>, vector<512x128xf32> -> vector<512x128xf32>
    %4 = vector.broadcast %2 : vector<1x128xf32> to vector<512x128xf32>
    %5 = arith.addf %3, %4 : vector<512x128xf32>
    %cst_4 = arith.constant 0.000000e+00 : f32
    %6 = vector.broadcast %cst_4 : f32 to vector<512x128xf32>
    %7 = arith.maximumf %5, %6 : vector<512x128xf32>
    %c136 = arith.constant 136 : index
    %c0_5 = arith.constant 0 : index
    %8 = vector.load %arg2[%c136, %c0_5] : memref<288x128xf32, #tpu.memory_space<vmem>>, vector<128x128xf32>
    %c264 = arith.constant 264 : index
    %c0_6 = arith.constant 0 : index
    %9 = vector.load %arg2[%c264, %c0_6] : memref<288x128xf32, #tpu.memory_space<vmem>>, vector<1x128xf32>
    %cst_7 = arith.constant dense<0.000000e+00> : vector<512x128xf32>
    %10 = tpu.matmul %7, %8, %cst_7 {dimension_numbers = #tpu.dot_dimension_numbers<[1], [0], [0], [1], [0, 0, 1, 1], [], []>} : vector<512x128xf32>, vector<128x128xf32>, vector<512x128xf32> -> vector<512x128xf32>
    %11 = vector.broadcast %9 : vector<1x128xf32> to vector<512x128xf32>
    %12 = arith.addf %10, %11 : vector<512x128xf32>
    %cst_8 = arith.constant 0.000000e+00 : f32
    %13 = vector.broadcast %cst_8 : f32 to vector<512x128xf32>
    %14 = arith.maximumf %12, %13 : vector<512x128xf32>
    %c272 = arith.constant 272 : index
    %c0_9 = arith.constant 0 : index
    %15 = vector.load %arg2[%c272, %c0_9] : memref<288x128xf32, #tpu.memory_space<vmem>>, vector<1x128xf32>
    %c280 = arith.constant 280 : index
    %c0_10 = arith.constant 0 : index
    %16 = vector.load %arg2[%c280, %c0_10] : memref<288x128xf32, #tpu.memory_space<vmem>>, vector<1x1xf32>
    %cst_11 = arith.constant dense<0.000000e+00> : vector<1x512xf32>
    %17 = tpu.matmul %15, %14, %cst_11 {dimension_numbers = #tpu.dot_dimension_numbers<[1], [1], [0], [0], [0, 0, 1, 0], [], []>} : vector<1x128xf32>, vector<512x128xf32>, vector<1x512xf32> -> vector<1x512xf32>
    %18 = vector.broadcast %16 : vector<1x1xf32> to vector<1x512xf32>
    %19 = arith.addf %17, %18 : vector<1x512xf32>
    %c0_12 = arith.constant 0 : index
    %c0_13 = arith.constant 0 : index
    %20 = vector.load %arg3[%c0_12, %c0_13] : memref<1x512xf32, #tpu.memory_space<vmem>>, vector<1x512xf32>
    tpu.vector_store %arg3[%c0_12, %c0_13], %19 {strides = array<i32>} : memref<1x512xf32, #tpu.memory_space<vmem>>, vector<1x512xf32>,
    return
  }
  func.func @transform_0(%arg0: i32) -> (i32, i32) {
    %c0_i32 = arith.constant 0 : i32
    %c0_i32_0 = arith.constant 0 : i32
    return %arg0, %c0_i32 : i32, i32
  }
  func.func @transform_1(%arg0: i32) -> (i32, i32) {
    %c0_i32 = arith.constant 0 : i32
    %c0_i32_0 = arith.constant 0 : i32
    %c0_i32_1 = arith.constant 0 : i32
    return %c0_i32, %c0_i32_0 : i32, i32
  }
  func.func @transform_2(%arg0: i32) -> (i32, i32) {
    %c0_i32 = arith.constant 0 : i32
    %c0_i32_0 = arith.constant 0 : i32
    return %c0_i32, %arg0 : i32, i32
  }
}

module attributes {stable_mosaic.version = 11 : i64} {
  func.func @kernel(%arg0: i32, %arg1: memref<512x128xf32, #tpu.memory_space<vmem>>, %arg2: memref<288x128xf32, #tpu.memory_space<vmem>>, %arg3: memref<1x512xf32, #tpu.memory_space<vmem>>) attributes {dimension_semantics = [#tpu.dimension_semantics<parallel>], iteration_bounds = array<i64: 2>, scalar_prefetch = 0 : i64, scratch_operands = 0 : i64, tpu.core_type = #tpu.core_type<tc>, window_params = [{transform_indices = @transform_0, window_bounds = array<i64: 512, 128>}, {pipeline_mode = #tpu.pipeline_mode<synchronous>, transform_indices = @transform_1, window_bounds = array<i64: 288, 128>}, {transform_indices = @transform_2, window_bounds = array<i64: 1, 512>}]} {
    %c0 = arith.constant 0 : index
    %c0_0 = arith.constant 0 : index
    %0 = vector.load %arg1[%c0, %c0_0] : memref<512x128xf32, #tpu.memory_space<vmem>>, vector<512x128xf32>
    %c0_1 = arith.constant 0 : index
    %c0_2 = arith.constant 0 : index
    %1 = vector.load %arg2[%c0_1, %c0_2] : memref<288x128xf32, #tpu.memory_space<vmem>>, vector<128x128xf32>
    %c128 = arith.constant 128 : index
    %c0_3 = arith.constant 0 : index
    %2 = vector.load %arg2[%c128, %c0_3] : memref<288x128xf32, #tpu.memory_space<vmem>>, vector<1x128xf32>
    %cst = arith.constant dense<0.000000e+00> : vector<512x128xf32>
    %3 = tpu.matmul %0, %1, %cst {dimension_numbers = #tpu.dot_dimension_numbers<[1], [0], [0], [1], [0, 0, 1, 1], [], []>} : vector<512x128xf32>, vector<128x128xf32>, vector<512x128xf32> -> vector<512x128xf32>
    %4 = vector.broadcast %2 : vector<1x128xf32> to vector<512x128xf32>
    %5 = arith.addf %3, %4 : vector<512x128xf32>
    %cst_4 = arith.constant 0.000000e+00 : f32
    %6 = vector.broadcast %cst_4 : f32 to vector<512x128xf32>
    %7 = arith.maximumf %5, %6 : vector<512x128xf32>
    %c136 = arith.constant 136 : index
    %c0_5 = arith.constant 0 : index
    %8 = vector.load %arg2[%c136, %c0_5] : memref<288x128xf32, #tpu.memory_space<vmem>>, vector<128x128xf32>
    %c264 = arith.constant 264 : index
    %c0_6 = arith.constant 0 : index
    %9 = vector.load %arg2[%c264, %c0_6] : memref<288x128xf32, #tpu.memory_space<vmem>>, vector<1x128xf32>
    %cst_7 = arith.constant dense<0.000000e+00> : vector<512x128xf32>
    %10 = tpu.matmul %7, %8, %cst_7 {dimension_numbers = #tpu.dot_dimension_numbers<[1], [0], [0], [1], [0, 0, 1, 1], [], []>} : vector<512x128xf32>, vector<128x128xf32>, vector<512x128xf32> -> vector<512x128xf32>
    %11 = vector.broadcast %9 : vector<1x128xf32> to vector<512x128xf32>
    %12 = arith.addf %10, %11 : vector<512x128xf32>
    %cst_8 = arith.constant 0.000000e+00 : f32
    %13 = vector.broadcast %cst_8 : f32 to vector<512x128xf32>
    %14 = arith.maximumf %12, %13 : vector<512x128xf32>
    %c272 = arith.constant 272 : index
    %c0_9 = arith.constant 0 : index
    %15 = vector.load %arg2[%c272, %c0_9] : memref<288x128xf32, #tpu.memory_space<vmem>>, vector<1x128xf32>
    %c280 = arith.constant 280 : index
    %c0_10 = arith.constant 0 : index
    %16 = vector.load %arg2[%c280, %c0_10] : memref<288x128xf32, #tpu.memory_space<vmem>>, vector<1x1xf32>
    %cst_11 = arith.constant dense<0.000000e+00> : vector<1x512xf32>
    %17 = tpu.matmul %15, %14, %cst_11 {dimension_numbers = #tpu.dot_dimension_numbers<[1], [1], [0], [0], [0, 0, 1, 0], [], []>} : vector<1x128xf32>, vector<512x128xf32>, vector<1x512xf32> -> vector<1x512xf32>
    %18 = vector.broadcast %16 : vector<1x1xf32> to vector<1x512xf32>
    %19 = arith.addf %17, %18 : vector<1x512xf32>
    %c0_12 = arith.constant 0 : index
    %c0_13 = arith.constant 0 : index
    %20 = vector.load %arg3[%c0_12, %c0_13] : memref<1x512xf32, #tpu.memory_space<vmem>>, vector<1x512xf32>
    tpu.vector_store %arg3[%c0_12, %c0_13], %19 {strides = array<i32>} : memref<1x512xf32, #tpu.memory_space<vmem>>, vector<1x512xf32>,
    return
  }
  func.func @transform_0(%arg0: i32) -> (i32, i32) {
    %c0_i32 = arith.constant 0 : i32
    %c0_i32_0 = arith.constant 0 : i32
    return %arg0, %c0_i32 : i32, i32
  }
  func.func @transform_1(%arg0: i32) -> (i32, i32) {
    %c0_i32 = arith.constant 0 : i32
    %c0_i32_0 = arith.constant 0 : i32
    %c0_i32_1 = arith.constant 0 : i32
    return %c0_i32, %c0_i32_0 : i32, i32
  }
  func.func @transform_2(%arg0: i32) -> (i32, i32) {
    %c0_i32 = arith.constant 0 : i32
    %c0_i32_0 = arith.constant 0 : i32
    return %c0_i32, %arg0 : i32, i32
  }
}

</mosaic_0001>

<llo_original>
// kernel: tpu_custom_call.1
$region0: #{tpu_custom_call.1}
  #allocation0 [shape = 'u32[]', space=smem, size = 0x4, offset = 0x4, fixed_abs, tag = 'smem constant byte address 0x4 - core index']
  #allocation1 [shape = 'u32[144,128]{1,0:T(1,128)}', space=vmem, size = 0x12000, scoped, tag = 'internal scratch']
  %s0 = inlined_call_operand.hbm [shape: f32[1024,128], index: 0, kind: input, shape index: {}]
  %s1 = inlined_call_operand.hbm [shape: f32[288,128], index: 1, kind: input, shape index: {}]
  %s2 = inlined_call_operand.hbm [shape: f32[1,1024], index: 2, kind: output, shape index: {}]
  %s3 = sld [smem:[#allocation0]]
  $region49: #{tpu_custom_call.1} parent=0
    _
  %s5 = ssub.s32 1, %s3
  %s6 = scalar_select 0, %s5, %s3
  $region1: #{tpu_custom_call.1} parent=0
    #allocation2 [shape = 'u8[524288]{0}', space=vmem, size = 0x80000, scoped, tag = 'input window, operand 0']
    #allocation3 [shape = 's32[2]{0}', space=sflag, size = 0x8, scoped, tag = 'scoped memory for tpu_custom_call.1']
    #allocation4 [shape = 's32[2]{0}', space=sflag, size = 0x8, scoped, tag = 'scoped memory for tpu_custom_call.1']
    #allocation5 [shape = 'u8[147456]{0}', space=vmem, size = 0x24000, scoped, tag = 'input window, operand 1, single buffered']
    #allocation6 [shape = 's32[1]{0}', space=sflag, size = 0x4, scoped, tag = 'scoped memory for tpu_custom_call.1']
    #allocation7 [shape = 'u8[4096]{0}', space=vmem, size = 0x1000, scoped, tag = 'output window, operand 0']
    %7 = vsyncpa [#allocation3], 0
    %s8 = scalar_lea.sflag [#allocation3], 1
    %9 = vsyncpa %s8, 0
    %10 = vsyncpa [#allocation6], 0
    %11 = vsyncpa [#allocation4], 0
    %s12 = scalar_lea.sflag [#allocation4], 1
    %13 = vsyncpa %s12, 0
    loop: start=0, step=1, limit=4
    $region2: #{tpu_custom_call.1} parent=1 // loop_pre_header
      _
    $region3: #{tpu_custom_call.1} parent=1 // loop_header
      %s15 = sphi 0, %s19
      %p16 = scmp.ge.s32.totalorder %s15, 4
      %s25 = sphi 0, %s27
      %s28 = sphi 0, %s25
      %s29 = sphi 0, %s28
      %s45 = sphi 0, %s29
      %s49 = sphi 0, %s49
      %s51 = sphi 0, %s49
      %s52 = sphi 0, %s51
      %s66 = sphi 0, %s52
      %s72 = sphi 0, %s74
      %s75 = sphi 0, %s72
      %s76 = sphi 0, %s75
      %s92 = sphi 0, %s76
    $region4: #{tpu_custom_call.1} parent=1 // loop_header_branch
      %18 = sbr.rel (%p16) target = $region8
    $region5: #{tpu_custom_call.1} parent=1 // loop_body
      %s20 = ssub.s32 %s15, 1
      %s21 = ssub.s32 %s15, 2
      %s22 = sadd.s32 %s15, 1
      %s23 = ssub.s32 %s15, %s22
      %p24 = scmp.eq.s32.totalorder %s23, 0
      %s26 = sadd.s32 %s25, 1
      %s27 = scalar_select %p24, %s25, %s26
      %p30 = pneg %p24
      %p31 = scmp.eq.s32.totalorder %s15, 1
      %p32 = por %p30, %p31
      %p33 = scmp.ne.s32.totalorder %s25, %s28
      %p34 = scmp.eq.s32.totalorder %s15, 0
      %p35 = por %p33, %p34
      %p36 = scmp.ne.s32.totalorder %s25, %s28
      %p37 = scmp.eq.s32.totalorder %s20, 1
      %p38 = por %p36, %p37
      %p39 = scmp.ne.s32.totalorder %s28, %s29
      %p40 = scmp.eq.s32.totalorder %s20, 0
      %p41 = por %p39, %p40
      %p42 = scmp.ne.s32.totalorder %s28, %s29
      %p43 = scmp.eq.s32.totalorder %s21, 1
      %p44 = por %p42, %p43
      %p46 = scmp.ne.s32.totalorder %s29, %s45
      %p47 = scmp.eq.s32.totalorder %s21, 0
      %p48 = por %p46, %p47
      %s50 = sadd.s32 %s49, 1
      %p53 = scmp.eq.s32.totalorder %s15, 1
      %p54 = scmp.ne.s32.totalorder %s49, %s51
      %p55 = scmp.eq.s32.totalorder %s15, 0
      %p56 = por %p54, %p55
      %p57 = scmp.ne.s32.totalorder %s49, %s51
      %p58 = scmp.eq.s32.totalorder %s20, 1
      %p59 = por %p57, %p58
      %p60 = scmp.ne.s32.totalorder %s51, %s52
      %p61 = scmp.eq.s32.totalorder %s20, 0
      %p62 = por %p60, %p61
      %p63 = scmp.ne.s32.totalorder %s51, %s52
      %p64 = scmp.eq.s32.totalorder %s21, 1
      %p65 = por %p63, %p64
      %p67 = scmp.ne.s32.totalorder %s52, %s66
      %p68 = scmp.eq.s32.totalorder %s21, 0
      %p69 = por %p67, %p68
      %s70 = ssub.s32 %s15, %s22
      %p71 = scmp.eq.s32.totalorder %s70, 0
      %s73 = sadd.s32 %s72, 1
      %s74 = scalar_select %p71, %s72, %s73
      %p77 = pneg %p71
      %p78 = scmp.eq.s32.totalorder %s15, 1
      %p79 = por %p77, %p78
      %p80 = scmp.ne.s32.totalorder %s72, %s75
      %p81 = scmp.eq.s32.totalorder %s15, 0
      %p82 = por %p80, %p81
      %p83 = scmp.ne.s32.totalorder %s72, %s75
      %p84 = scmp.eq.s32.totalorder %s20, 1
      %p85 = por %p83, %p84
      %p86 = scmp.ne.s32.totalorder %s75, %s76
      %p87 = scmp.eq.s32.totalorder %s20, 0
      %p88 = por %p86, %p87
      %p89 = scmp.ne.s32.totalorder %s75, %s76
      %p90 = scmp.eq.s32.totalorder %s21, 1
      %p91 = por %p89, %p90
      %p93 = scmp.ne.s32.totalorder %s76, %s92
      %p94 = scmp.eq.s32.totalorder %s21, 0
      %p95 = por %p93, %p94
      %p96 = scmp.le.s32.totalorder 1, %s15
      %p97 = scmp.lt.s32.totalorder %s15, 3
      %p98 = pnand %p96, %p97
      %p99 = pneg %p98
      // Predicated region
      $region9: #{tpu_custom_call.1} parent=5 // pred_check
        _
      $region10: #{tpu_custom_call.1} parent=5 // pred_check_branch
        %101 = sbr.rel (%p98) target = $region12
      $region11: #{tpu_custom_call.1} parent=5 // pred_region
        %s102 = ssub.s32 %s15, 1
        // Predicated region
        $region13: #{tpu_custom_call.1} parent=11 // pred_check
          %p103 = pneg %p62
        $region14: #{tpu_custom_call.1} parent=11 // pred_check_branch
          %105 = sbr.rel (%p103) target = $region16
        $region15: #{tpu_custom_call.1} parent=11 // pred_region
          %s107 = ssub.s32 4608, 4608
          %108 = vsyncadd [#allocation6], %s107
          %s109 = sshll.u32 [#allocation5], 4
          %s110 = int_to_ptr.vmem [resolvable:$true] %s109
          %115 = dma.hbm_to_vmem [thread:$0]  %s1, 4608, %s110, [#allocation6], 128, 128, 8
        $region16: #{tpu_custom_call.1} parent=11 // pred_fallthru
          _
      $region12: #{tpu_custom_call.1} parent=5 // pred_fallthru
        _
      %p116 = scmp.lt.s32.totalorder %s15, 2
      // Predicated region
      $region17: #{tpu_custom_call.1} parent=5 // pred_check
        %p117 = pneg %p116
      $region18: #{tpu_custom_call.1} parent=5 // pred_check_branch
        %119 = sbr.rel (%p117) target = $region20
      $region19: #{tpu_custom_call.1} parent=5 // pred_region
        // Predicated region
        $region21: #{tpu_custom_call.1} parent=19 // pred_check
          %p120 = pneg %p35
        $region22: #{tpu_custom_call.1} parent=19 // pred_check_branch
          %122 = sbr.rel (%p120) target = $region24
        $region23: #{tpu_custom_call.1} parent=19 // pred_region
          %s123 = sand.u32 %s25, 1
          %s124 = scalar_lea.sflag [#allocation3], %s123
          %s125 = sand.u32 %s25, 1
          %s126 = smul.addr %s125, 512
          %s127 = scalar_lea.vmem [#allocation2], %s126
          %s128 = smul.u32 64, %s15
          %s130 = ssub.s32 8192, 8192
          %131 = vsyncadd %s124, %s130
          %s132 = smul.addr %s128, 128
          %s133 = scalar_lea.hbm %s0, %s132
          %s134 = sshll.u32 %s127, 4
          %s135 = int_to_ptr.vmem [resolvable:$true] %s134
          %140 = dma.hbm_to_vmem [thread:$0]  %s133, 8192, %s135, %s124, 128, 128, 8
        $region24: #{tpu_custom_call.1} parent=19 // pred_fallthru
          _
      $region20: #{tpu_custom_call.1} parent=5 // pred_fallthru
        _
      %p141 = scmp.le.s32.totalorder 1, %s15
      %p142 = scmp.lt.s32.totalorder %s15, 3
      %p143 = pnand %p141, %p142
      %p144 = pneg %p143
      // Predicated region
      $region25: #{tpu_custom_call.1} parent=5 // pred_check
        _
      $region26: #{tpu_custom_call.1} parent=5 // pred_check_branch
        %146 = sbr.rel (%p143) target = $region28
      $region27: #{tpu_custom_call.1} parent=5 // pred_region
        %s147 = ssub.s32 %s15, 1
        %s148 = sand.u32 %s28, 1
        %s149 = scalar_lea.sflag [#allocation3], %s148
        %s150 = sand.u32 %s28, 1
        %s151 = smul.addr %s150, 512
        %s152 = scalar_lea.vmem [#allocation2], %s151
        // Predicated region
        $region29: #{tpu_custom_call.1} parent=27 // pred_check
          %p153 = pneg %p41
        $region30: #{tpu_custom_call.1} parent=27 // pred_check_branch
          %155 = sbr.rel (%p153) target = $region32
        $region31: #{tpu_custom_call.1} parent=27 // pred_region
          %156 = dma.done %s149, 8192
        $region32: #{tpu_custom_call.1} parent=27 // pred_fallthru
          _
        // Predicated region
        $region33: #{tpu_custom_call.1} parent=27 // pred_check
          %p157 = pneg %p62
        $region34: #{tpu_custom_call.1} parent=27 // pred_check_branch
          %159 = sbr.rel (%p157) target = $region36
        $region35: #{tpu_custom_call.1} parent=27 // pred_region
          %160 = dma.done [#allocation6], 4608
        $region36: #{tpu_custom_call.1} parent=27 // pred_fallthru
          _
        %s161 = sand.u32 %s28, 1
        %s162 = scalar_lea.sflag [#allocation3], %s161
        %s163 = sand.u32 %s28, 1
        %s164 = smul.addr %s163, 512
        %s165 = scalar_lea.vmem [#allocation2], %s164
        %p166 = pneg %p41
        %p167 = pneg %p38
        %p168 = pneg %p62
        %p169 = pneg %p59
        %p170 = pneg %p88
        %p171 = pneg %p85
        %s172 = sand.u32 %s75, 1
        %s173 = scalar_lea.sflag [#allocation4], %s172
        %s174 = sand.u32 %s75, 1
        %s175 = smul.addr %s174, 4
        %s176 = scalar_lea.vmem [#allocation7], %s175
        %s177 = smul.u32 64, %s20
        %s178 = smul.u32 4, %s20
        %v179 = vld [vmem:[%s152] sm:$0xff]
        %v180 = vld [vmem:[%s152 + $0x8] sm:$0xff]
        %v181 = vld [vmem:[%s152 + $0x10] sm:$0xff]
        %v182 = vld [vmem:[%s152 + $0x18] sm:$0xff]
        %v183 = vld [vmem:[%s152 + $0x20] sm:$0xff]
        %v184 = vld [vmem:[%s152 + $0x28] sm:$0xff]
        %v185 = vld [vmem:[%s152 + $0x30] sm:$0xff]
        %v186 = vld [vmem:[%s152 + $0x38] sm:$0xff]
        %v187 = vld [vmem:[%s152 + $0x40] sm:$0xff]
        %v188 = vld [vmem:[%s152 + $0x48] sm:$0xff]
        %v189 = vld [vmem:[%s152 + $0x50] sm:$0xff]
        %v190 = vld [vmem:[%s152 + $0x58] sm:$0xff]
        %v191 = vld [vmem:[%s152 + $0x60] sm:$0xff]
        %v192 = vld [vmem:[%s152 + $0x68] sm:$0xff]
        %v193 = vld [vmem:[%s152 + $0x70] sm:$0xff]
        %v194 = vld [vmem:[%s152 + $0x78] sm:$0xff]
        %v195 = vld [vmem:[%s152 + $0x80] sm:$0xff]
        %v196 = vld [vmem:[%s152 + $0x88] sm:$0xff]
        %v197 = vld [vmem:[%s152 + $0x90] sm:$0xff]
        %v198 = vld [vmem:[%s152 + $0x98] sm:$0xff]
        %v199 = vld [vmem:[%s152 + $0xa0] sm:$0xff]
        %v200 = vld [vmem:[%s152 + $0xa8] sm:$0xff]
        %v201 = vld [vmem:[%s152 + $0xb0] sm:$0xff]
        %v202 = vld [vmem:[%s152 + $0xb8] sm:$0xff]
        %v203 = vld [vmem:[%s152 + $0xc0] sm:$0xff]
        %v204 = vld [vmem:[%s152 + $0xc8] sm:$0xff]
        %v205 = vld [vmem:[%s152 + $0xd0] sm:$0xff]
        %v206 = vld [vmem:[%s152 + $0xd8] sm:$0xff]
        %v207 = vld [vmem:[%s152 + $0xe0] sm:$0xff]
        %v208 = vld [vmem:[%s152 + $0xe8] sm:$0xff]
        %v209 = vld [vmem:[%s152 + $0xf0] sm:$0xff]
        %v210 = vld [vmem:[%s152 + $0xf8] sm:$0xff]
        %v211 = vld [vmem:[%s152 + $0x100] sm:$0xff]
        %v212 = vld [vmem:[%s152 + $0x108] sm:$0xff]
        %v213 = vld [vmem:[%s152 + $0x110] sm:$0xff]
        %v214 = vld [vmem:[%s152 + $0x118] sm:$0xff]
        %v215 = vld [vmem:[%s152 + $0x120] sm:$0xff]
        %v216 = vld [vmem:[%s152 + $0x128] sm:$0xff]
        %v217 = vld [vmem:[%s152 + $0x130] sm:$0xff]
        %v218 = vld [vmem:[%s152 + $0x138] sm:$0xff]
        %v219 = vld [vmem:[%s152 + $0x140] sm:$0xff]
        %v220 = vld [vmem:[%s152 + $0x148] sm:$0xff]
        %v221 = vld [vmem:[%s152 + $0x150] sm:$0xff]
        %v222 = vld [vmem:[%s152 + $0x158] sm:$0xff]
        %v223 = vld [vmem:[%s152 + $0x160] sm:$0xff]
        %v224 = vld [vmem:[%s152 + $0x168] sm:$0xff]
        %v225 = vld [vmem:[%s152 + $0x170] sm:$0xff]
        %v226 = vld [vmem:[%s152 + $0x178] sm:$0xff]
        %v227 = vld [vmem:[%s152 + $0x180] sm:$0xff]
        %v228 = vld [vmem:[%s152 + $0x188] sm:$0xff]
        %v229 = vld [vmem:[%s152 + $0x190] sm:$0xff]
        %v230 = vld [vmem:[%s152 + $0x198] sm:$0xff]
        %v231 = vld [vmem:[%s152 + $0x1a0] sm:$0xff]
        %v232 = vld [vmem:[%s152 + $0x1a8] sm:$0xff]
        %v233 = vld [vmem:[%s152 + $0x1b0] sm:$0xff]
        %v234 = vld [vmem:[%s152 + $0x1b8] sm:$0xff]
        %v235 = vld [vmem:[%s152 + $0x1c0] sm:$0xff]
        %v236 = vld [vmem:[%s152 + $0x1c8] sm:$0xff]
        %v237 = vld [vmem:[%s152 + $0x1d0] sm:$0xff]
        %v238 = vld [vmem:[%s152 + $0x1d8] sm:$0xff]
        %v239 = vld [vmem:[%s152 + $0x1e0] sm:$0xff]
        %v240 = vld [vmem:[%s152 + $0x1e8] sm:$0xff]
        %v241 = vld [vmem:[%s152 + $0x1f0] sm:$0xff]
        %v242 = vld [vmem:[%s152 + $0x1f8] sm:$0xff]
        %v243 = vld [vmem:[#allocation5] sm:$0xff]
        %v244 = vld [vmem:[#allocation5 + $0x8] sm:$0xff]
        %v245 = vld [vmem:[#allocation5 + $0x10] sm:$0xff]
        %v246 = vld [vmem:[#allocation5 + $0x18] sm:$0xff]
        %v247 = vld [vmem:[#allocation5 + $0x20] sm:$0xff]
        %v248 = vld [vmem:[#allocation5 + $0x28] sm:$0xff]
        %v249 = vld [vmem:[#allocation5 + $0x30] sm:$0xff]
        %v250 = vld [vmem:[#allocation5 + $0x38] sm:$0xff]
        %v251 = vld [vmem:[#allocation5 + $0x40] sm:$0xff]
        %v252 = vld [vmem:[#allocation5 + $0x48] sm:$0xff]
        %v253 = vld [vmem:[#allocation5 + $0x50] sm:$0xff]
        %v254 = vld [vmem:[#allocation5 + $0x58] sm:$0xff]
        %v255 = vld [vmem:[#allocation5 + $0x60] sm:$0xff]
        %v256 = vld [vmem:[#allocation5 + $0x68] sm:$0xff]
        %v257 = vld [vmem:[#allocation5 + $0x70] sm:$0xff]
        %v258 = vld [vmem:[#allocation5 + $0x78] sm:$0xff]
        %v259 = vld [vmem:[#allocation5 + $0x80] sm:$0x1]
        %v260 = vlaneseq
        %v261 = vshrl.u32 %v260, 7
        %v262 = vsub.s32 0, %v261
        %v263 = vrot.slane %v259, %v262
        %264 = vmatprep.subr.mxu0 0.0
        %265 = vmatpush1.msra.mxu0 %v258
        %266 = vmatprep.subr.mxu0 0.0
        %267 = vmatpush1.msra.mxu0 %v257
        %268 = vmatprep.subr.mxu0 0.0
        %269 = vmatpush1.msra.mxu0 %v256
        %270 = vmatprep.subr.mxu0 0.0
        %271 = vmatpush1.msra.mxu0 %v255
        %272 = vmatprep.subr.mxu0 0.0
        %273 = vmatpush1.msra.mxu0 %v254
        %274 = vmatprep.subr.mxu0 0.0
        %275 = vmatpush1.msra.mxu0 %v253
        %276 = vmatprep.subr.mxu0 0.0
        %277 = vmatpush1.msra.mxu0 %v252
        %278 = vmatprep.subr.mxu0 0.0
        %279 = vmatpush1.msra.mxu0 %v251
        %280 = vmatprep.subr.mxu0 0.0
        %281 = vmatpush1.msra.mxu0 %v250
        %282 = vmatprep.subr.mxu0 0.0
        %283 = vmatpush1.msra.mxu0 %v249
        %284 = vmatprep.subr.mxu0 0.0
        %285 = vmatpush1.msra.mxu0 %v248
        %286 = vmatprep.subr.mxu0 0.0
        %287 = vmatpush1.msra.mxu0 %v247
        %288 = vmatprep.subr.mxu0 0.0
        %289 = vmatpush1.msra.mxu0 %v246
        %290 = vmatprep.subr.mxu0 0.0
        %291 = vmatpush1.msra.mxu0 %v245
        %292 = vmatprep.subr.mxu0 0.0
        %293 = vmatpush1.msra.mxu0 %v244
        %294 = vmatprep.subr.mxu0 0.0
        %295 = vmatpush1.msra.mxu0 %v243
        %296 = vmatprep.subr.mxu0 0.0
        %297 = vmatpush2.msra.mxu0 0.0
        %298 = vmatprep.subr.mxu0 0.0
        %299 = vmatpush2.msra.mxu0 0.0
        %300 = vmatprep.subr.mxu0 0.0
        %301 = vmatpush2.msra.mxu0 0.0
        %302 = vmatprep.subr.mxu0 0.0
        %303 = vmatpush2.msra.mxu0 0.0
        %304 = vmatprep.subr.mxu0 0.0
        %305 = vmatpush2.msra.mxu0 0.0
        %306 = vmatprep.subr.mxu0 0.0
        %307 = vmatpush2.msra.mxu0 0.0
        %308 = vmatprep.subr.mxu0 0.0
        %309 = vmatpush2.msra.mxu0 0.0
        %310 = vmatprep.subr.mxu0 0.0
        %311 = vmatpush2.msra.mxu0 0.0
        %312 = vmatprep.subr.mxu0 0.0
        %313 = vmatpush2.msra.mxu0 0.0
        %314 = vmatprep.subr.mxu0 0.0
        %315 = vmatpush2.msra.mxu0 0.0
        %316 = vmatprep.subr.mxu0 0.0
        %317 = vmatpush2.msra.mxu0 0.0
        %318 = vmatprep.subr.mxu0 0.0
        %319 = vmatpush2.msra.mxu0 0.0
        %320 = vmatprep.subr.mxu0 0.0
        %321 = vmatpush2.msra.mxu0 0.0
        %322 = vmatprep.subr.mxu0 0.0
        %323 = vmatpush2.msra.mxu0 0.0
        %324 = vmatprep.subr.mxu0 0.0
        %325 = vmatpush2.msra.mxu0 0.0
        %326 = vmatprep.subr.mxu0 0.0
        %327 = vmatpush2.msra.mxu0 0.0
        %328 = vmatprep.mubr.f32.mxu0 0.0
        %329 = vmatmul.mubr.f32.gmra.mxu0 %v179
        %v330 = vpop.f32.mrf.mxu0
        %v331 = vadd.f32 %v263, %v330
        %v332 = vpop.f32.mrf.mxu0
        %333 = vmatprep.mubr.f32.mxu0 0.0
        %334 = vmatmul.mubr.f32.gmra.mxu0 %v180
        %v335 = vpop.f32.mrf.mxu0
        %v336 = vadd.f32 %v263, %v335
        %v337 = vpop.f32.mrf.mxu0
        %338 = vmatprep.mubr.f32.mxu0 0.0
        %339 = vmatmul.mubr.f32.gmra.mxu0 %v181
        %v340 = vpop.f32.mrf.mxu0
        %v341 = vadd.f32 %v263, %v340
        %v342 = vpop.f32.mrf.mxu0
        %343 = vmatprep.mubr.f32.mxu0 0.0
        %344 = vmatmul.mubr.f32.gmra.mxu0 %v182
        %v345 = vpop.f32.mrf.mxu0
        %v346 = vadd.f32 %v263, %v345
        %v347 = vpop.f32.mrf.mxu0
        %348 = vmatprep.mubr.f32.mxu0 0.0
        %349 = vmatmul.mubr.f32.gmra.mxu0 %v183
        %v350 = vpop.f32.mrf.mxu0
        %v351 = vadd.f32 %v263, %v350
        %v352 = vpop.f32.mrf.mxu0
        %353 = vmatprep.mubr.f32.mxu0 0.0
        %354 = vmatmul.mubr.f32.gmra.mxu0 %v184
        %v355 = vpop.f32.mrf.mxu0
        %v356 = vadd.f32 %v263, %v355
        %v357 = vpop.f32.mrf.mxu0
        %358 = vmatprep.mubr.f32.mxu0 0.0
        %359 = vmatmul.mubr.f32.gmra.mxu0 %v185
        %v360 = vpop.f32.mrf.mxu0
        %v361 = vadd.f32 %v263, %v360
        %v362 = vpop.f32.mrf.mxu0
        %363 = vmatprep.mubr.f32.mxu0 0.0
        %364 = vmatmul.mubr.f32.gmra.mxu0 %v186
        %v365 = vpop.f32.mrf.mxu0
        %v366 = vadd.f32 %v263, %v365
        %v367 = vpop.f32.mrf.mxu0
        %368 = vmatprep.mubr.f32.mxu0 0.0
        %369 = vmatmul.mubr.f32.gmra.mxu0 %v187
        %v370 = vpop.f32.mrf.mxu0
        %v371 = vadd.f32 %v263, %v370
        %v372 = vpop.f32.mrf.mxu0
        %373 = vmatprep.mubr.f32.mxu0 0.0
        %374 = vmatmul.mubr.f32.gmra.mxu0 %v188
        %v375 = vpop.f32.mrf.mxu0
        %v376 = vadd.f32 %v263, %v375
        %v377 = vpop.f32.mrf.mxu0
        %378 = vmatprep.mubr.f32.mxu0 0.0
        %379 = vmatmul.mubr.f32.gmra.mxu0 %v189
        %v380 = vpop.f32.mrf.mxu0
        %v381 = vadd.f32 %v263, %v380
        %v382 = vpop.f32.mrf.mxu0
        %383 = vmatprep.mubr.f32.mxu0 0.0
        %384 = vmatmul.mubr.f32.gmra.mxu0 %v190
        %v385 = vpop.f32.mrf.mxu0
        %v386 = vadd.f32 %v263, %v385
        %v387 = vpop.f32.mrf.mxu0
        %388 = vmatprep.mubr.f32.mxu0 0.0
        %389 = vmatmul.mubr.f32.gmra.mxu0 %v191
        %v390 = vpop.f32.mrf.mxu0
        %v391 = vadd.f32 %v263, %v390
        %v392 = vpop.f32.mrf.mxu0
        %393 = vmatprep.mubr.f32.mxu0 0.0
        %394 = vmatmul.mubr.f32.gmra.mxu0 %v192
        %v395 = vpop.f32.mrf.mxu0
        %v396 = vadd.f32 %v263, %v395
        %v397 = vpop.f32.mrf.mxu0
        %398 = vmatprep.mubr.f32.mxu0 0.0
        %399 = vmatmul.mubr.f32.gmra.mxu0 %v193
        %v400 = vpop.f32.mrf.mxu0
        %v401 = vadd.f32 %v263, %v400
        %v402 = vpop.f32.mrf.mxu0
        %403 = vmatprep.mubr.f32.mxu0 0.0
        %404 = vmatmul.mubr.f32.gmra.mxu0 %v194
        %v405 = vpop.f32.mrf.mxu0
        %v406 = vadd.f32 %v263, %v405
        %v407 = vpop.f32.mrf.mxu0
        %408 = vmatprep.mubr.f32.mxu0 0.0
        %409 = vmatmul.mubr.f32.gmra.mxu0 %v195
        %v410 = vpop.f32.mrf.mxu0
        %v411 = vadd.f32 %v263, %v410
        %v412 = vpop.f32.mrf.mxu0
        %413 = vmatprep.mubr.f32.mxu0 0.0
        %414 = vmatmul.mubr.f32.gmra.mxu0 %v196
        %v415 = vpop.f32.mrf.mxu0
        %v416 = vadd.f32 %v263, %v415
        %v417 = vpop.f32.mrf.mxu0
        %418 = vmatprep.mubr.f32.mxu0 0.0
        %419 = vmatmul.mubr.f32.gmra.mxu0 %v197
        %v420 = vpop.f32.mrf.mxu0
        %v421 = vadd.f32 %v263, %v420
        %v422 = vpop.f32.mrf.mxu0
        %423 = vmatprep.mubr.f32.mxu0 0.0
        %424 = vmatmul.mubr.f32.gmra.mxu0 %v198
        %v425 = vpop.f32.mrf.mxu0
        %v426 = vadd.f32 %v263, %v425
        %v427 = vpop.f32.mrf.mxu0
        %428 = vmatprep.mubr.f32.mxu0 0.0
        %429 = vmatmul.mubr.f32.gmra.mxu0 %v199
        %v430 = vpop.f32.mrf.mxu0
        %v431 = vadd.f32 %v263, %v430
        %v432 = vpop.f32.mrf.mxu0
        %433 = vmatprep.mubr.f32.mxu0 0.0
        %434 = vmatmul.mubr.f32.gmra.mxu0 %v200
        %v435 = vpop.f32.mrf.mxu0
        %v436 = vadd.f32 %v263, %v435
        %v437 = vpop.f32.mrf.mxu0
        %438 = vmatprep.mubr.f32.mxu0 0.0
        %439 = vmatmul.mubr.f32.gmra.mxu0 %v201
        %v440 = vpop.f32.mrf.mxu0
        %v441 = vadd.f32 %v263, %v440
        %v442 = vpop.f32.mrf.mxu0
        %443 = vmatprep.mubr.f32.mxu0 0.0
        %444 = vmatmul.mubr.f32.gmra.mxu0 %v202
        %v445 = vpop.f32.mrf.mxu0
        %v446 = vadd.f32 %v263, %v445
        %v447 = vpop.f32.mrf.mxu0
        %448 = vmatprep.mubr.f32.mxu0 0.0
        %449 = vmatmul.mubr.f32.gmra.mxu0 %v203
        %v450 = vpop.f32.mrf.mxu0
        %v451 = vadd.f32 %v263, %v450
        %v452 = vpop.f32.mrf.mxu0
        %453 = vmatprep.mubr.f32.mxu0 0.0
        %454 = vmatmul.mubr.f32.gmra.mxu0 %v204
        %v455 = vpop.f32.mrf.mxu0
        %v456 = vadd.f32 %v263, %v455
        %v457 = vpop.f32.mrf.mxu0
        %458 = vmatprep.mubr.f32.mxu0 0.0
        %459 = vmatmul.mubr.f32.gmra.mxu0 %v205
        %v460 = vpop.f32.mrf.mxu0
        %v461 = vadd.f32 %v263, %v460
        %v462 = vpop.f32.mrf.mxu0
        %463 = vmatprep.mubr.f32.mxu0 0.0
        %464 = vmatmul.mubr.f32.gmra.mxu0 %v206
        %v465 = vpop.f32.mrf.mxu0
        %v466 = vadd.f32 %v263, %v465
        %v467 = vpop.f32.mrf.mxu0
        %468 = vmatprep.mubr.f32.mxu0 0.0
        %469 = vmatmul.mubr.f32.gmra.mxu0 %v207
        %v470 = vpop.f32.mrf.mxu0
        %v471 = vadd.f32 %v263, %v470
        %v472 = vpop.f32.mrf.mxu0
        %473 = vmatprep.mubr.f32.mxu0 0.0
        %474 = vmatmul.mubr.f32.gmra.mxu0 %v208
        %v475 = vpop.f32.mrf.mxu0
        %v476 = vadd.f32 %v263, %v475
        %v477 = vpop.f32.mrf.mxu0
        %478 = vmatprep.mubr.f32.mxu0 0.0
        %479 = vmatmul.mubr.f32.gmra.mxu0 %v209
        %v480 = vpop.f32.mrf.mxu0
        %v481 = vadd.f32 %v263, %v480
        %v482 = vpop.f32.mrf.mxu0
        %483 = vmatprep.mubr.f32.mxu0 0.0
        %484 = vmatmul.mubr.f32.gmra.mxu0 %v210
        %v485 = vpop.f32.mrf.mxu0
        %v486 = vadd.f32 %v263, %v485
        %v487 = vpop.f32.mrf.mxu0
        %488 = vmatprep.mubr.f32.mxu0 0.0
        %489 = vmatmul.mubr.f32.gmra.mxu0 %v211
        %v490 = vpop.f32.mrf.mxu0
        %v491 = vadd.f32 %v263, %v490
        %v492 = vpop.f32.mrf.mxu0
        %493 = vmatprep.mubr.f32.mxu0 0.0
        %494 = vmatmul.mubr.f32.gmra.mxu0 %v212
        %v495 = vpop.f32.mrf.mxu0
        %v496 = vadd.f32 %v263, %v495
        %v497 = vpop.f32.mrf.mxu0
        %498 = vmatprep.mubr.f32.mxu0 0.0
        %499 = vmatmul.mubr.f32.gmra.mxu0 %v213
        %v500 = vpop.f32.mrf.mxu0
        %v501 = vadd.f32 %v263, %v500
        %v502 = vpop.f32.mrf.mxu0
        %503 = vmatprep.mubr.f32.mxu0 0.0
        %504 = vmatmul.mubr.f32.gmra.mxu0 %v214
        %v505 = vpop.f32.mrf.mxu0
        %v506 = vadd.f32 %v263, %v505
        %v507 = vpop.f32.mrf.mxu0
        %508 = vmatprep.mubr.f32.mxu0 0.0
        %509 = vmatmul.mubr.f32.gmra.mxu0 %v215
        %v510 = vpop.f32.mrf.mxu0
        %v511 = vadd.f32 %v263, %v510
        %v512 = vpop.f32.mrf.mxu0
        %513 = vmatprep.mubr.f32.mxu0 0.0
        %514 = vmatmul.mubr.f32.gmra.mxu0 %v216
        %v515 = vpop.f32.mrf.mxu0
        %v516 = vadd.f32 %v263, %v515
        %v517 = vpop.f32.mrf.mxu0
        %518 = vmatprep.mubr.f32.mxu0 0.0
        %519 = vmatmul.mubr.f32.gmra.mxu0 %v217
        %v520 = vpop.f32.mrf.mxu0
        %v521 = vadd.f32 %v263, %v520
        %v522 = vpop.f32.mrf.mxu0
        %523 = vmatprep.mubr.f32.mxu0 0.0
        %524 = vmatmul.mubr.f32.gmra.mxu0 %v218
        %v525 = vpop.f32.mrf.mxu0
        %v526 = vadd.f32 %v263, %v525
        %v527 = vpop.f32.mrf.mxu0
        %528 = vmatprep.mubr.f32.mxu0 0.0
        %529 = vmatmul.mubr.f32.gmra.mxu0 %v219
        %v530 = vpop.f32.mrf.mxu0
        %v531 = vadd.f32 %v263, %v530
        %v532 = vpop.f32.mrf.mxu0
        %533 = vmatprep.mubr.f32.mxu0 0.0
        %534 = vmatmul.mubr.f32.gmra.mxu0 %v220
        %v535 = vpop.f32.mrf.mxu0
        %v536 = vadd.f32 %v263, %v535
        %v537 = vpop.f32.mrf.mxu0
        %538 = vmatprep.mubr.f32.mxu0 0.0
        %539 = vmatmul.mubr.f32.gmra.mxu0 %v221
        %v540 = vpop.f32.mrf.mxu0
        %v541 = vadd.f32 %v263, %v540
        %v542 = vpop.f32.mrf.mxu0
        %543 = vmatprep.mubr.f32.mxu0 0.0
        %544 = vmatmul.mubr.f32.gmra.mxu0 %v222
        %v545 = vpop.f32.mrf.mxu0
        %v546 = vadd.f32 %v263, %v545
        %v547 = vpop.f32.mrf.mxu0
        %548 = vmatprep.mubr.f32.mxu0 0.0
        %549 = vmatmul.mubr.f32.gmra.mxu0 %v223
        %v550 = vpop.f32.mrf.mxu0
        %v551 = vadd.f32 %v263, %v550
        %v552 = vpop.f32.mrf.mxu0
        %553 = vmatprep.mubr.f32.mxu0 0.0
        %554 = vmatmul.mubr.f32.gmra.mxu0 %v224
        %v555 = vpop.f32.mrf.mxu0
        %v556 = vadd.f32 %v263, %v555
        %v557 = vpop.f32.mrf.mxu0
        %558 = vmatprep.mubr.f32.mxu0 0.0
        %559 = vmatmul.mubr.f32.gmra.mxu0 %v225
        %v560 = vpop.f32.mrf.mxu0
        %v561 = vadd.f32 %v263, %v560
        %v562 = vpop.f32.mrf.mxu0
        %563 = vmatprep.mubr.f32.mxu0 0.0
        %564 = vmatmul.mubr.f32.gmra.mxu0 %v226
        %v565 = vpop.f32.mrf.mxu0
        %v566 = vadd.f32 %v263, %v565
        %v567 = vpop.f32.mrf.mxu0
        %568 = vmatprep.mubr.f32.mxu0 0.0
        %569 = vmatmul.mubr.f32.gmra.mxu0 %v227
        %v570 = vpop.f32.mrf.mxu0
        %v571 = vadd.f32 %v263, %v570
        %v572 = vpop.f32.mrf.mxu0
        %573 = vmatprep.mubr.f32.mxu0 0.0
        %574 = vmatmul.mubr.f32.gmra.mxu0 %v228
        %v575 = vpop.f32.mrf.mxu0
        %v576 = vadd.f32 %v263, %v575
        %v577 = vpop.f32.mrf.mxu0
        %578 = vmatprep.mubr.f32.mxu0 0.0
        %579 = vmatmul.mubr.f32.gmra.mxu0 %v229
        %v580 = vpop.f32.mrf.mxu0
        %v581 = vadd.f32 %v263, %v580
        %v582 = vpop.f32.mrf.mxu0
        %583 = vmatprep.mubr.f32.mxu0 0.0
        %584 = vmatmul.mubr.f32.gmra.mxu0 %v230
        %v585 = vpop.f32.mrf.mxu0
        %v586 = vadd.f32 %v263, %v585
        %v587 = vpop.f32.mrf.mxu0
        %588 = vmatprep.mubr.f32.mxu0 0.0
        %589 = vmatmul.mubr.f32.gmra.mxu0 %v231
        %v590 = vpop.f32.mrf.mxu0
        %v591 = vadd.f32 %v263, %v590
        %v592 = vpop.f32.mrf.mxu0
        %593 = vmatprep.mubr.f32.mxu0 0.0
        %594 = vmatmul.mubr.f32.gmra.mxu0 %v232
        %v595 = vpop.f32.mrf.mxu0
        %v596 = vadd.f32 %v263, %v595
        %v597 = vpop.f32.mrf.mxu0
        %598 = vmatprep.mubr.f32.mxu0 0.0
        %599 = vmatmul.mubr.f32.gmra.mxu0 %v233
        %v600 = vpop.f32.mrf.mxu0
        %v601 = vadd.f32 %v263, %v600
        %v602 = vpop.f32.mrf.mxu0
        %603 = vmatprep.mubr.f32.mxu0 0.0
        %604 = vmatmul.mubr.f32.gmra.mxu0 %v234
        %v605 = vpop.f32.mrf.mxu0
        %v606 = vadd.f32 %v263, %v605
        %v607 = vpop.f32.mrf.mxu0
        %608 = vmatprep.mubr.f32.mxu0 0.0
        %609 = vmatmul.mubr.f32.gmra.mxu0 %v235
        %v610 = vpop.f32.mrf.mxu0
        %v611 = vadd.f32 %v263, %v610
        %v612 = vpop.f32.mrf.mxu0
        %613 = vmatprep.mubr.f32.mxu0 0.0
        %614 = vmatmul.mubr.f32.gmra.mxu0 %v236
        %v615 = vpop.f32.mrf.mxu0
        %v616 = vadd.f32 %v263, %v615
        %v617 = vpop.f32.mrf.mxu0
        %618 = vmatprep.mubr.f32.mxu0 0.0
        %619 = vmatmul.mubr.f32.gmra.mxu0 %v237
        %v620 = vpop.f32.mrf.mxu0
        %v621 = vadd.f32 %v263, %v620
        %v622 = vpop.f32.mrf.mxu0
        %623 = vmatprep.mubr.f32.mxu0 0.0
        %624 = vmatmul.mubr.f32.gmra.mxu0 %v238
        %v625 = vpop.f32.mrf.mxu0
        %v626 = vadd.f32 %v263, %v625
        %v627 = vpop.f32.mrf.mxu0
        %628 = vmatprep.mubr.f32.mxu0 0.0
        %629 = vmatmul.mubr.f32.gmra.mxu0 %v239
        %v630 = vpop.f32.mrf.mxu0
        %v631 = vadd.f32 %v263, %v630
        %v632 = vpop.f32.mrf.mxu0
        %633 = vmatprep.mubr.f32.mxu0 0.0
        %634 = vmatmul.mubr.f32.gmra.mxu0 %v240
        %v635 = vpop.f32.mrf.mxu0
        %v636 = vadd.f32 %v263, %v635
        %v637 = vpop.f32.mrf.mxu0
        %638 = vmatprep.mubr.f32.mxu0 0.0
        %639 = vmatmul.mubr.f32.gmra.mxu0 %v241
        %v640 = vpop.f32.mrf.mxu0
        %v641 = vadd.f32 %v263, %v640
        %v642 = vpop.f32.mrf.mxu0
        %643 = vmatprep.mubr.f32.mxu0 0.0
        %644 = vmatmul.mubr.f32.gmra.mxu0 %v242
        %v645 = vpop.f32.mrf.mxu0
        %v646 = vadd.f32 %v263, %v645
        %v647 = vpop.f32.mrf.mxu0
        %648 = vdwg.mxu0
        %v649 = vmax.f32 %v331, 0.0
        %v650 = vmax.f32 %v336, 0.0
        %v651 = vmax.f32 %v341, 0.0
        %v652 = vmax.f32 %v346, 0.0
        %v653 = vmax.f32 %v351, 0.0
        %v654 = vmax.f32 %v356, 0.0
        %v655 = vmax.f32 %v361, 0.0
        %v656 = vmax.f32 %v366, 0.0
        %v657 = vmax.f32 %v371, 0.0
        %v658 = vmax.f32 %v376, 0.0
        %v659 = vmax.f32 %v381, 0.0
        %v660 = vmax.f32 %v386, 0.0
        %v661 = vmax.f32 %v391, 0.0
        %v662 = vmax.f32 %v396, 0.0
        %v663 = vmax.f32 %v401, 0.0
        %v664 = vmax.f32 %v406, 0.0
        %v665 = vmax.f32 %v411, 0.0
        %v666 = vmax.f32 %v416, 0.0
        %v667 = vmax.f32 %v421, 0.0
        %v668 = vmax.f32 %v426, 0.0
        %v669 = vmax.f32 %v431, 0.0
        %v670 = vmax.f32 %v436, 0.0
        %v671 = vmax.f32 %v441, 0.0
        %v672 = vmax.f32 %v446, 0.0
        %v673 = vmax.f32 %v451, 0.0
        %v674 = vmax.f32 %v456, 0.0
        %v675 = vmax.f32 %v461, 0.0
        %v676 = vmax.f32 %v466, 0.0
        %v677 = vmax.f32 %v471, 0.0
        %v678 = vmax.f32 %v476, 0.0
        %v679 = vmax.f32 %v481, 0.0
        %v680 = vmax.f32 %v486, 0.0
        %v681 = vmax.f32 %v491, 0.0
        %v682 = vmax.f32 %v496, 0.0
        %v683 = vmax.f32 %v501, 0.0
        %v684 = vmax.f32 %v506, 0.0
        %v685 = vmax.f32 %v511, 0.0
        %v686 = vmax.f32 %v516, 0.0
        %v687 = vmax.f32 %v521, 0.0
        %v688 = vmax.f32 %v526, 0.0
        %v689 = vmax.f32 %v531, 0.0
        %v690 = vmax.f32 %v536, 0.0
        %v691 = vmax.f32 %v541, 0.0
        %v692 = vmax.f32 %v546, 0.0
        %v693 = vmax.f32 %v551, 0.0
        %v694 = vmax.f32 %v556, 0.0
        %v695 = vmax.f32 %v561, 0.0
        %v696 = vmax.f32 %v566, 0.0
        %v697 = vmax.f32 %v571, 0.0
        %v698 = vmax.f32 %v576, 0.0
        %v699 = vmax.f32 %v581, 0.0
        %v700 = vmax.f32 %v586, 0.0
        %v701 = vmax.f32 %v591, 0.0
        %v702 = vmax.f32 %v596, 0.0
        %v703 = vmax.f32 %v601, 0.0
        %v704 = vmax.f32 %v606, 0.0
        %v705 = vmax.f32 %v611, 0.0
        %v706 = vmax.f32 %v616, 0.0
        %v707 = vmax.f32 %v621, 0.0
        %v708 = vmax.f32 %v626, 0.0
        %v709 = vmax.f32 %v631, 0.0
        %v710 = vmax.f32 %v636, 0.0
        %v711 = vmax.f32 %v641, 0.0
        %v712 = vmax.f32 %v646, 0.0
        %v713 = vld [vmem:[#allocation5 + $0x88] sm:$0xff]
        %v714 = vld [vmem:[#allocation5 + $0x90] sm:$0xff]
        %v715 = vld [vmem:[#allocation5 + $0x98] sm:$0xff]
        %v716 = vld [vmem:[#allocation5 + $0xa0] sm:$0xff]
        %v717 = vld [vmem:[#allocation5 + $0xa8] sm:$0xff]
        %v718 = vld [vmem:[#allocation5 + $0xb0] sm:$0xff]
        %v719 = vld [vmem:[#allocation5 + $0xb8] sm:$0xff]
        %v720 = vld [vmem:[#allocation5 + $0xc0] sm:$0xff]
        %v721 = vld [vmem:[#allocation5 + $0xc8] sm:$0xff]
        %v722 = vld [vmem:[#allocation5 + $0xd0] sm:$0xff]
        %v723 = vld [vmem:[#allocation5 + $0xd8] sm:$0xff]
        %v724 = vld [vmem:[#allocation5 + $0xe0] sm:$0xff]
        %v725 = vld [vmem:[#allocation5 + $0xe8] sm:$0xff]
        %v726 = vld [vmem:[#allocation5 + $0xf0] sm:$0xff]
        %v727 = vld [vmem:[#allocation5 + $0xf8] sm:$0xff]
        %v728 = vld [vmem:[#allocation5 + $0x100] sm:$0xff]
        %v729 = vld [vmem:[#allocation5 + $0x108] sm:$0x1]
        %v730 = vlaneseq
        %v731 = vshrl.u32 %v730, 7
        %v732 = vsub.s32 0, %v731
        %v733 = vrot.slane %v729, %v732
        %734 = vmatprep.subr.mxu0 0.0
        %735 = vmatpush1.msra.mxu0 %v728
        %736 = vmatprep.subr.mxu0 0.0
        %737 = vmatpush1.msra.mxu0 %v727
        %738 = vmatprep.subr.mxu0 0.0
        %739 = vmatpush1.msra.mxu0 %v726
        %740 = vmatprep.subr.mxu0 0.0
        %741 = vmatpush1.msra.mxu0 %v725
        %742 = vmatprep.subr.mxu0 0.0
        %743 = vmatpush1.msra.mxu0 %v724
        %744 = vmatprep.subr.mxu0 0.0
        %745 = vmatpush1.msra.mxu0 %v723
        %746 = vmatprep.subr.mxu0 0.0
        %747 = vmatpush1.msra.mxu0 %v722
        %748 = vmatprep.subr.mxu0 0.0
        %749 = vmatpush1.msra.mxu0 %v721
        %750 = vmatprep.subr.mxu0 0.0
        %751 = vmatpush1.msra.mxu0 %v720
        %752 = vmatprep.subr.mxu0 0.0
        %753 = vmatpush1.msra.mxu0 %v719
        %754 = vmatprep.subr.mxu0 0.0
        %755 = vmatpush1.msra.mxu0 %v718
        %756 = vmatprep.subr.mxu0 0.0
        %757 = vmatpush1.msra.mxu0 %v717
        %758 = vmatprep.subr.mxu0 0.0
        %759 = vmatpush1.msra.mxu0 %v716
        %760 = vmatprep.subr.mxu0 0.0
        %761 = vmatpush1.msra.mxu0 %v715
        %762 = vmatprep.subr.mxu0 0.0
        %763 = vmatpush1.msra.mxu0 %v714
        %764 = vmatprep.subr.mxu0 0.0
        %765 = vmatpush1.msra.mxu0 %v713
        %766 = vmatprep.subr.mxu0 0.0
        %767 = vmatpush2.msra.mxu0 0.0
        %768 = vmatprep.subr.mxu0 0.0
        %769 = vmatpush2.msra.mxu0 0.0
        %770 = vmatprep.subr.mxu0 0.0
        %771 = vmatpush2.msra.mxu0 0.0
        %772 = vmatprep.subr.mxu0 0.0
        %773 = vmatpush2.msra.mxu0 0.0
        %774 = vmatprep.subr.mxu0 0.0
        %775 = vmatpush2.msra.mxu0 0.0
        %776 = vmatprep.subr.mxu0 0.0
        %777 = vmatpush2.msra.mxu0 0.0
        %778 = vmatprep.subr.mxu0 0.0
        %779 = vmatpush2.msra.mxu0 0.0
        %780 = vmatprep.subr.mxu0 0.0
        %781 = vmatpush2.msra.mxu0 0.0
        %782 = vmatprep.subr.mxu0 0.0
        %783 = vmatpush2.msra.mxu0 0.0
        %784 = vmatprep.subr.mxu0 0.0
        %785 = vmatpush2.msra.mxu0 0.0
        %786 = vmatprep.subr.mxu0 0.0
        %787 = vmatpush2.msra.mxu0 0.0
        %788 = vmatprep.subr.mxu0 0.0
        %789 = vmatpush2.msra.mxu0 0.0
        %790 = vmatprep.subr.mxu0 0.0
        %791 = vmatpush2.msra.mxu0 0.0
        %792 = vmatprep.subr.mxu0 0.0
        %793 = vmatpush2.msra.mxu0 0.0
        %794 = vmatprep.subr.mxu0 0.0
        %795 = vmatpush2.msra.mxu0 0.0
        %796 = vmatprep.subr.mxu0 0.0
        %797 = vmatpush2.msra.mxu0 0.0
        %798 = vmatprep.mubr.f32.mxu0 0.0
        %799 = vmatmul.mubr.f32.gmra.mxu0 %v649
        %v800 = vpop.f32.mrf.mxu0
        %v801 = vadd.f32 %v733, %v800
        %v802 = vpop.f32.mrf.mxu0
        %803 = vmatprep.mubr.f32.mxu0 0.0
        %804 = vmatmul.mubr.f32.gmra.mxu0 %v650
        %v805 = vpop.f32.mrf.mxu0
        %v806 = vadd.f32 %v733, %v805
        %v807 = vpop.f32.mrf.mxu0
        %808 = vmatprep.mubr.f32.mxu0 0.0
        %809 = vmatmul.mubr.f32.gmra.mxu0 %v651
        %v810 = vpop.f32.mrf.mxu0
        %v811 = vadd.f32 %v733, %v810
        %v812 = vpop.f32.mrf.mxu0
        %813 = vmatprep.mubr.f32.mxu0 0.0
        %814 = vmatmul.mubr.f32.gmra.mxu0 %v652
        %v815 = vpop.f32.mrf.mxu0
        %v816 = vadd.f32 %v733, %v815
        %v817 = vpop.f32.mrf.mxu0
        %818 = vmatprep.mubr.f32.mxu0 0.0
        %819 = vmatmul.mubr.f32.gmra.mxu0 %v653
        %v820 = vpop.f32.mrf.mxu0
        %v821 = vadd.f32 %v733, %v820
        %v822 = vpop.f32.mrf.mxu0
        %823 = vmatprep.mubr.f32.mxu0 0.0
        %824 = vmatmul.mubr.f32.gmra.mxu0 %v654
        %v825 = vpop.f32.mrf.mxu0
        %v826 = vadd.f32 %v733, %v825
        %v827 = vpop.f32.mrf.mxu0
        %828 = vmatprep.mubr.f32.mxu0 0.0
        %829 = vmatmul.mubr.f32.gmra.mxu0 %v655
        %v830 = vpop.f32.mrf.mxu0
        %v831 = vadd.f32 %v733, %v830
        %v832 = vpop.f32.mrf.mxu0
        %833 = vmatprep.mubr.f32.mxu0 0.0
        %834 = vmatmul.mubr.f32.gmra.mxu0 %v656
        %v835 = vpop.f32.mrf.mxu0
        %v836 = vadd.f32 %v733, %v835
        %v837 = vpop.f32.mrf.mxu0
        %838 = vmatprep.mubr.f32.mxu0 0.0
        %839 = vmatmul.mubr.f32.gmra.mxu0 %v657
        %v840 = vpop.f32.mrf.mxu0
        %v841 = vadd.f32 %v733, %v840
        %v842 = vpop.f32.mrf.mxu0
        %843 = vmatprep.mubr.f32.mxu0 0.0
        %844 = vmatmul.mubr.f32.gmra.mxu0 %v658
        %v845 = vpop.f32.mrf.mxu0
        %v846 = vadd.f32 %v733, %v845
        %v847 = vpop.f32.mrf.mxu0
        %848 = vmatprep.mubr.f32.mxu0 0.0
        %849 = vmatmul.mubr.f32.gmra.mxu0 %v659
        %v850 = vpop.f32.mrf.mxu0
        %v851 = vadd.f32 %v733, %v850
        %v852 = vpop.f32.mrf.mxu0
        %853 = vmatprep.mubr.f32.mxu0 0.0
        %854 = vmatmul.mubr.f32.gmra.mxu0 %v660
        %v855 = vpop.f32.mrf.mxu0
        %v856 = vadd.f32 %v733, %v855
        %v857 = vpop.f32.mrf.mxu0
        %858 = vmatprep.mubr.f32.mxu0 0.0
        %859 = vmatmul.mubr.f32.gmra.mxu0 %v661
        %v860 = vpop.f32.mrf.mxu0
        %v861 = vadd.f32 %v733, %v860
        %v862 = vpop.f32.mrf.mxu0
        %863 = vmatprep.mubr.f32.mxu0 0.0
        %864 = vmatmul.mubr.f32.gmra.mxu0 %v662
        %v865 = vpop.f32.mrf.mxu0
        %v866 = vadd.f32 %v733, %v865
        %v867 = vpop.f32.mrf.mxu0
        %868 = vmatprep.mubr.f32.mxu0 0.0
        %869 = vmatmul.mubr.f32.gmra.mxu0 %v663
        %v870 = vpop.f32.mrf.mxu0
        %v871 = vadd.f32 %v733, %v870
        %v872 = vpop.f32.mrf.mxu0
        %873 = vmatprep.mubr.f32.mxu0 0.0
        %874 = vmatmul.mubr.f32.gmra.mxu0 %v664
        %v875 = vpop.f32.mrf.mxu0
        %v876 = vadd.f32 %v733, %v875
        %v877 = vpop.f32.mrf.mxu0
        %878 = vmatprep.mubr.f32.mxu0 0.0
        %879 = vmatmul.mubr.f32.gmra.mxu0 %v665
        %v880 = vpop.f32.mrf.mxu0
        %v881 = vadd.f32 %v733, %v880
        %v882 = vpop.f32.mrf.mxu0
        %883 = vmatprep.mubr.f32.mxu0 0.0
        %884 = vmatmul.mubr.f32.gmra.mxu0 %v666
        %v885 = vpop.f32.mrf.mxu0
        %v886 = vadd.f32 %v733, %v885
        %v887 = vpop.f32.mrf.mxu0
        %888 = vmatprep.mubr.f32.mxu0 0.0
        %889 = vmatmul.mubr.f32.gmra.mxu0 %v667
        %v890 = vpop.f32.mrf.mxu0
        %v891 = vadd.f32 %v733, %v890
        %v892 = vpop.f32.mrf.mxu0
        %893 = vmatprep.mubr.f32.mxu0 0.0
        %894 = vmatmul.mubr.f32.gmra.mxu0 %v668
        %v895 = vpop.f32.mrf.mxu0
        %v896 = vadd.f32 %v733, %v895
        %v897 = vpop.f32.mrf.mxu0
        %898 = vmatprep.mubr.f32.mxu0 0.0
        %899 = vmatmul.mubr.f32.gmra.mxu0 %v669
        %v900 = vpop.f32.mrf.mxu0
        %v901 = vadd.f32 %v733, %v900
        %v902 = vpop.f32.mrf.mxu0
        %903 = vmatprep.mubr.f32.mxu0 0.0
        %904 = vmatmul.mubr.f32.gmra.mxu0 %v670
        %v905 = vpop.f32.mrf.mxu0
        %v906 = vadd.f32 %v733, %v905
        %v907 = vpop.f32.mrf.mxu0
        %908 = vmatprep.mubr.f32.mxu0 0.0
        %909 = vmatmul.mubr.f32.gmra.mxu0 %v671
        %v910 = vpop.f32.mrf.mxu0
        %v911 = vadd.f32 %v733, %v910
        %v912 = vpop.f32.mrf.mxu0
        %913 = vmatprep.mubr.f32.mxu0 0.0
        %914 = vmatmul.mubr.f32.gmra.mxu0 %v672
        %v915 = vpop.f32.mrf.mxu0
        %v916 = vadd.f32 %v733, %v915
        %v917 = vpop.f32.mrf.mxu0
        %918 = vmatprep.mubr.f32.mxu0 0.0
        %919 = vmatmul.mubr.f32.gmra.mxu0 %v673
        %v920 = vpop.f32.mrf.mxu0
        %v921 = vadd.f32 %v733, %v920
        %v922 = vpop.f32.mrf.mxu0
        %923 = vmatprep.mubr.f32.mxu0 0.0
        %924 = vmatmul.mubr.f32.gmra.mxu0 %v674
        %v925 = vpop.f32.mrf.mxu0
        %v926 = vadd.f32 %v733, %v925
        %v927 = vpop.f32.mrf.mxu0
        %928 = vmatprep.mubr.f32.mxu0 0.0
        %929 = vmatmul.mubr.f32.gmra.mxu0 %v675
        %v930 = vpop.f32.mrf.mxu0
        %v931 = vadd.f32 %v733, %v930
        %v932 = vpop.f32.mrf.mxu0
        %933 = vmatprep.mubr.f32.mxu0 0.0
        %934 = vmatmul.mubr.f32.gmra.mxu0 %v676
        %v935 = vpop.f32.mrf.mxu0
        %v936 = vadd.f32 %v733, %v935
        %v937 = vpop.f32.mrf.mxu0
        %938 = vmatprep.mubr.f32.mxu0 0.0
        %939 = vmatmul.mubr.f32.gmra.mxu0 %v677
        %v940 = vpop.f32.mrf.mxu0
        %v941 = vadd.f32 %v733, %v940
        %v942 = vpop.f32.mrf.mxu0
        %943 = vmatprep.mubr.f32.mxu0 0.0
        %944 = vmatmul.mubr.f32.gmra.mxu0 %v678
        %v945 = vpop.f32.mrf.mxu0
        %v946 = vadd.f32 %v733, %v945
        %v947 = vpop.f32.mrf.mxu0
        %948 = vmatprep.mubr.f32.mxu0 0.0
        %949 = vmatmul.mubr.f32.gmra.mxu0 %v679
        %v950 = vpop.f32.mrf.mxu0
        %v951 = vadd.f32 %v733, %v950
        %v952 = vpop.f32.mrf.mxu0
        %953 = vmatprep.mubr.f32.mxu0 0.0
        %954 = vmatmul.mubr.f32.gmra.mxu0 %v680
        %v955 = vpop.f32.mrf.mxu0
        %v956 = vadd.f32 %v733, %v955
        %v957 = vpop.f32.mrf.mxu0
        %958 = vmatprep.mubr.f32.mxu0 0.0
        %959 = vmatmul.mubr.f32.gmra.mxu0 %v681
        %v960 = vpop.f32.mrf.mxu0
        %v961 = vadd.f32 %v733, %v960
        %v962 = vpop.f32.mrf.mxu0
        %963 = vmatprep.mubr.f32.mxu0 0.0
        %964 = vmatmul.mubr.f32.gmra.mxu0 %v682
        %v965 = vpop.f32.mrf.mxu0
        %v966 = vadd.f32 %v733, %v965
        %v967 = vpop.f32.mrf.mxu0
        %968 = vmatprep.mubr.f32.mxu0 0.0
        %969 = vmatmul.mubr.f32.gmra.mxu0 %v683
        %v970 = vpop.f32.mrf.mxu0
        %v971 = vadd.f32 %v733, %v970
        %v972 = vpop.f32.mrf.mxu0
        %973 = vmatprep.mubr.f32.mxu0 0.0
        %974 = vmatmul.mubr.f32.gmra.mxu0 %v684
        %v975 = vpop.f32.mrf.mxu0
        %v976 = vadd.f32 %v733, %v975
        %v977 = vpop.f32.mrf.mxu0
        %978 = vmatprep.mubr.f32.mxu0 0.0
        %979 = vmatmul.mubr.f32.gmra.mxu0 %v685
        %v980 = vpop.f32.mrf.mxu0
        %v981 = vadd.f32 %v733, %v980
        %v982 = vpop.f32.mrf.mxu0
        %983 = vmatprep.mubr.f32.mxu0 0.0
        %984 = vmatmul.mubr.f32.gmra.mxu0 %v686
        %v985 = vpop.f32.mrf.mxu0
        %v986 = vadd.f32 %v733, %v985
        %v987 = vpop.f32.mrf.mxu0
        %988 = vmatprep.mubr.f32.mxu0 0.0
        %989 = vmatmul.mubr.f32.gmra.mxu0 %v687
        %v990 = vpop.f32.mrf.mxu0
        %v991 = vadd.f32 %v733, %v990
        %v992 = vpop.f32.mrf.mxu0
        %993 = vmatprep.mubr.f32.mxu0 0.0
        %994 = vmatmul.mubr.f32.gmra.mxu0 %v688
        %v995 = vpop.f32.mrf.mxu0
        %v996 = vadd.f32 %v733, %v995
        %v997 = vpop.f32.mrf.mxu0
        %998 = vmatprep.mubr.f32.mxu0 0.0
        %999 = vmatmul.mubr.f32.gmra.mxu0 %v689
        %v1000 = vpop.f32.mrf.mxu0
        %v1001 = vadd.f32 %v733, %v1000
        %v1002 = vpop.f32.mrf.mxu0
        %1003 = vmatprep.mubr.f32.mxu0 0.0
        %1004 = vmatmul.mubr.f32.gmra.mxu0 %v690
        %v1005 = vpop.f32.mrf.mxu0
        %v1006 = vadd.f32 %v733, %v1005
        %v1007 = vpop.f32.mrf.mxu0
        %1008 = vmatprep.mubr.f32.mxu0 0.0
        %1009 = vmatmul.mubr.f32.gmra.mxu0 %v691
        %v1010 = vpop.f32.mrf.mxu0
        %v1011 = vadd.f32 %v733, %v1010
        %v1012 = vpop.f32.mrf.mxu0
        %1013 = vmatprep.mubr.f32.mxu0 0.0
        %1014 = vmatmul.mubr.f32.gmra.mxu0 %v692
        %v1015 = vpop.f32.mrf.mxu0
        %v1016 = vadd.f32 %v733, %v1015
        %v1017 = vpop.f32.mrf.mxu0
        %1018 = vmatprep.mubr.f32.mxu0 0.0
        %1019 = vmatmul.mubr.f32.gmra.mxu0 %v693
        %v1020 = vpop.f32.mrf.mxu0
        %v1021 = vadd.f32 %v733, %v1020
        %v1022 = vpop.f32.mrf.mxu0
        %1023 = vmatprep.mubr.f32.mxu0 0.0
        %1024 = vmatmul.mubr.f32.gmra.mxu0 %v694
        %v1025 = vpop.f32.mrf.mxu0
        %v1026 = vadd.f32 %v733, %v1025
        %v1027 = vpop.f32.mrf.mxu0
        %1028 = vmatprep.mubr.f32.mxu0 0.0
        %1029 = vmatmul.mubr.f32.gmra.mxu0 %v695
        %v1030 = vpop.f32.mrf.mxu0
        %v1031 = vadd.f32 %v733, %v1030
        %v1032 = vpop.f32.mrf.mxu0
        %1033 = vmatprep.mubr.f32.mxu0 0.0
        %1034 = vmatmul.mubr.f32.gmra.mxu0 %v696
        %v1035 = vpop.f32.mrf.mxu0
        %v1036 = vadd.f32 %v733, %v1035
        %v1037 = vpop.f32.mrf.mxu0
        %1038 = vmatprep.mubr.f32.mxu0 0.0
        %1039 = vmatmul.mubr.f32.gmra.mxu0 %v697
        %v1040 = vpop.f32.mrf.mxu0
        %v1041 = vadd.f32 %v733, %v1040
        %v1042 = vpop.f32.mrf.mxu0
        %1043 = vmatprep.mubr.f32.mxu0 0.0
        %1044 = vmatmul.mubr.f32.gmra.mxu0 %v698
        %v1045 = vpop.f32.mrf.mxu0
        %v1046 = vadd.f32 %v733, %v1045
        %v1047 = vpop.f32.mrf.mxu0
        %1048 = vmatprep.mubr.f32.mxu0 0.0
        %1049 = vmatmul.mubr.f32.gmra.mxu0 %v699
        %v1050 = vpop.f32.mrf.mxu0
        %v1051 = vadd.f32 %v733, %v1050
        %v1052 = vpop.f32.mrf.mxu0
        %1053 = vmatprep.mubr.f32.mxu0 0.0
        %1054 = vmatmul.mubr.f32.gmra.mxu0 %v700
        %v1055 = vpop.f32.mrf.mxu0
        %v1056 = vadd.f32 %v733, %v1055
        %v1057 = vpop.f32.mrf.mxu0
        %1058 = vmatprep.mubr.f32.mxu0 0.0
        %1059 = vmatmul.mubr.f32.gmra.mxu0 %v701
        %v1060 = vpop.f32.mrf.mxu0
        %v1061 = vadd.f32 %v733, %v1060
        %v1062 = vpop.f32.mrf.mxu0
        %1063 = vmatprep.mubr.f32.mxu0 0.0
        %1064 = vmatmul.mubr.f32.gmra.mxu0 %v702
        %v1065 = vpop.f32.mrf.mxu0
        %v1066 = vadd.f32 %v733, %v1065
        %v1067 = vpop.f32.mrf.mxu0
        %1068 = vmatprep.mubr.f32.mxu0 0.0
        %1069 = vmatmul.mubr.f32.gmra.mxu0 %v703
        %v1070 = vpop.f32.mrf.mxu0
        %v1071 = vadd.f32 %v733, %v1070
        %v1072 = vpop.f32.mrf.mxu0
        %1073 = vmatprep.mubr.f32.mxu0 0.0
        %1074 = vmatmul.mubr.f32.gmra.mxu0 %v704
        %v1075 = vpop.f32.mrf.mxu0
        %v1076 = vadd.f32 %v733, %v1075
        %v1077 = vpop.f32.mrf.mxu0
        %1078 = vmatprep.mubr.f32.mxu0 0.0
        %1079 = vmatmul.mubr.f32.gmra.mxu0 %v705
        %v1080 = vpop.f32.mrf.mxu0
        %v1081 = vadd.f32 %v733, %v1080
        %v1082 = vpop.f32.mrf.mxu0
        %1083 = vmatprep.mubr.f32.mxu0 0.0
        %1084 = vmatmul.mubr.f32.gmra.mxu0 %v706
        %v1085 = vpop.f32.mrf.mxu0
        %v1086 = vadd.f32 %v733, %v1085
        %v1087 = vpop.f32.mrf.mxu0
        %1088 = vmatprep.mubr.f32.mxu0 0.0
        %1089 = vmatmul.mubr.f32.gmra.mxu0 %v707
        %v1090 = vpop.f32.mrf.mxu0
        %v1091 = vadd.f32 %v733, %v1090
        %v1092 = vpop.f32.mrf.mxu0
        %1093 = vmatprep.mubr.f32.mxu0 0.0
        %1094 = vmatmul.mubr.f32.gmra.mxu0 %v708
        %v1095 = vpop.f32.mrf.mxu0
        %v1096 = vadd.f32 %v733, %v1095
        %v1097 = vpop.f32.mrf.mxu0
        %1098 = vmatprep.mubr.f32.mxu0 0.0
        %1099 = vmatmul.mubr.f32.gmra.mxu0 %v709
        %v1100 = vpop.f32.mrf.mxu0
        %v1101 = vadd.f32 %v733, %v1100
        %v1102 = vpop.f32.mrf.mxu0
        %1103 = vmatprep.mubr.f32.mxu0 0.0
        %1104 = vmatmul.mubr.f32.gmra.mxu0 %v710
        %v1105 = vpop.f32.mrf.mxu0
        %v1106 = vadd.f32 %v733, %v1105
        %v1107 = vpop.f32.mrf.mxu0
        %1108 = vmatprep.mubr.f32.mxu0 0.0
        %1109 = vmatmul.mubr.f32.gmra.mxu0 %v711
        %v1110 = vpop.f32.mrf.mxu0
        %v1111 = vadd.f32 %v733, %v1110
        %v1112 = vpop.f32.mrf.mxu0
        %1113 = vmatprep.mubr.f32.mxu0 0.0
        %1114 = vmatmul.mubr.f32.gmra.mxu0 %v712
        %v1115 = vpop.f32.mrf.mxu0
        %v1116 = vadd.f32 %v733, %v1115
        %v1117 = vpop.f32.mrf.mxu0
        %1118 = vdwg.mxu0
        %v1119 = vmax.f32 %v801, 0.0
        %v1120 = vmax.f32 %v806, 0.0
        %v1121 = vmax.f32 %v811, 0.0
        %v1122 = vmax.f32 %v816, 0.0
        %v1123 = vmax.f32 %v821, 0.0
        %v1124 = vmax.f32 %v826, 0.0
        %v1125 = vmax.f32 %v831, 0.0
        %v1126 = vmax.f32 %v836, 0.0
        %v1127 = vmax.f32 %v841, 0.0
        %v1128 = vmax.f32 %v846, 0.0
        %v1129 = vmax.f32 %v851, 0.0
        %v1130 = vmax.f32 %v856, 0.0
        %v1131 = vmax.f32 %v861, 0.0
        %v1132 = vmax.f32 %v866, 0.0
        %v1133 = vmax.f32 %v871, 0.0
        %v1134 = vmax.f32 %v876, 0.0
        %v1135 = vmax.f32 %v881, 0.0
        %v1136 = vmax.f32 %v886, 0.0
        %v1137 = vmax.f32 %v891, 0.0
        %v1138 = vmax.f32 %v896, 0.0
        %v1139 = vmax.f32 %v901, 0.0
        %v1140 = vmax.f32 %v906, 0.0
        %v1141 = vmax.f32 %v911, 0.0
        %v1142 = vmax.f32 %v916, 0.0
        %v1143 = vmax.f32 %v921, 0.0
        %v1144 = vmax.f32 %v926, 0.0
        %v1145 = vmax.f32 %v931, 0.0
        %v1146 = vmax.f32 %v936, 0.0
        %v1147 = vmax.f32 %v941, 0.0
        %v1148 = vmax.f32 %v946, 0.0
        %v1149 = vmax.f32 %v951, 0.0
        %v1150 = vmax.f32 %v956, 0.0
        %v1151 = vmax.f32 %v961, 0.0
        %v1152 = vmax.f32 %v966, 0.0
        %v1153 = vmax.f32 %v971, 0.0
        %v1154 = vmax.f32 %v976, 0.0
        %v1155 = vmax.f32 %v981, 0.0
        %v1156 = vmax.f32 %v986, 0.0
        %v1157 = vmax.f32 %v991, 0.0
        %v1158 = vmax.f32 %v996, 0.0
        %v1159 = vmax.f32 %v1001, 0.0
        %v1160 = vmax.f32 %v1006, 0.0
        %v1161 = vmax.f32 %v1011, 0.0
        %v1162 = vmax.f32 %v1016, 0.0
        %v1163 = vmax.f32 %v1021, 0.0
        %v1164 = vmax.f32 %v1026, 0.0
        %v1165 = vmax.f32 %v1031, 0.0
        %v1166 = vmax.f32 %v1036, 0.0
        %v1167 = vmax.f32 %v1041, 0.0
        %v1168 = vmax.f32 %v1046, 0.0
        %v1169 = vmax.f32 %v1051, 0.0
        %v1170 = vmax.f32 %v1056, 0.0
        %v1171 = vmax.f32 %v1061, 0.0
        %v1172 = vmax.f32 %v1066, 0.0
        %v1173 = vmax.f32 %v1071, 0.0
        %v1174 = vmax.f32 %v1076, 0.0
        %v1175 = vmax.f32 %v1081, 0.0
        %v1176 = vmax.f32 %v1086, 0.0
        %v1177 = vmax.f32 %v1091, 0.0
        %v1178 = vmax.f32 %v1096, 0.0
        %v1179 = vmax.f32 %v1101, 0.0
        %v1180 = vmax.f32 %v1106, 0.0
        %v1181 = vmax.f32 %v1111, 0.0
        %v1182 = vmax.f32 %v1116, 0.0
        %v1183 = vld [vmem:[#allocation5 + $0x110] sm:$0x1]
        %v1184 = vld [vmem:[#allocation5 + $0x118] sm:$0x1]
        %1186 = vset.pattern.permute.xlu0 0
        %1187 = vperm.xlu0 %1186, %v1184
        %v1188 = vpop.permute.xlu0 %1187
        %1190 = vmatprep.subr.mxu0 0.0
        %1191 = vmatpush1.xpose.msra.mxu0 %v1134
        %1192 = vmatprep.subr.mxu0 0.0
        %1193 = vmatpush1.xpose.msra.mxu0 %v1133
        %1194 = vmatprep.subr.mxu0 0.0
        %1195 = vmatpush1.xpose.msra.mxu0 %v1132
        %1196 = vmatprep.subr.mxu0 0.0
        %1197 = vmatpush1.xpose.msra.mxu0 %v1131
        %1198 = vmatprep.subr.mxu0 0.0
        %1199 = vmatpush1.xpose.msra.mxu0 %v1130
        %1200 = vmatprep.subr.mxu0 0.0
        %1201 = vmatpush1.xpose.msra.mxu0 %v1129
        %1202 = vmatprep.subr.mxu0 0.0
        %1203 = vmatpush1.xpose.msra.mxu0 %v1128
        %1204 = vmatprep.subr.mxu0 0.0
        %1205 = vmatpush1.xpose.msra.mxu0 %v1127
        %1206 = vmatprep.subr.mxu0 0.0
        %1207 = vmatpush1.xpose.msra.mxu0 %v1126
        %1208 = vmatprep.subr.mxu0 0.0
        %1209 = vmatpush1.xpose.msra.mxu0 %v1125
        %1210 = vmatprep.subr.mxu0 0.0
        %1211 = vmatpush1.xpose.msra.mxu0 %v1124
        %1212 = vmatprep.subr.mxu0 0.0
        %1213 = vmatpush1.xpose.msra.mxu0 %v1123
        %1214 = vmatprep.subr.mxu0 0.0
        %1215 = vmatpush1.xpose.msra.mxu0 %v1122
        %1216 = vmatprep.subr.mxu0 0.0
        %1217 = vmatpush1.xpose.msra.mxu0 %v1121
        %1218 = vmatprep.subr.mxu0 0.0
        %1219 = vmatpush1.xpose.msra.mxu0 %v1120
        %1220 = vmatprep.subr.mxu0 0.0
        %1221 = vmatpush1.xpose.msra.mxu0 %v1119
        %1222 = vmatprep.subr.mxu0 0.0
        %1223 = vmatpush2.xpose.msra.mxu0 %v1150
        %1224 = vmatprep.subr.mxu0 0.0
        %1225 = vmatpush2.xpose.msra.mxu0 %v1149
        %1226 = vmatprep.subr.mxu0 0.0
        %1227 = vmatpush2.xpose.msra.mxu0 %v1148
        %1228 = vmatprep.subr.mxu0 0.0
        %1229 = vmatpush2.xpose.msra.mxu0 %v1147
        %1230 = vmatprep.subr.mxu0 0.0
        %1231 = vmatpush2.xpose.msra.mxu0 %v1146
        %1232 = vmatprep.subr.mxu0 0.0
        %1233 = vmatpush2.xpose.msra.mxu0 %v1145
        %1234 = vmatprep.subr.mxu0 0.0
        %1235 = vmatpush2.xpose.msra.mxu0 %v1144
        %1236 = vmatprep.subr.mxu0 0.0
        %1237 = vmatpush2.xpose.msra.mxu0 %v1143
        %1238 = vmatprep.subr.mxu0 0.0
        %1239 = vmatpush2.xpose.msra.mxu0 %v1142
        %1240 = vmatprep.subr.mxu0 0.0
        %1241 = vmatpush2.xpose.msra.mxu0 %v1141
        %1242 = vmatprep.subr.mxu0 0.0
        %1243 = vmatpush2.xpose.msra.mxu0 %v1140
        %1244 = vmatprep.subr.mxu0 0.0
        %1245 = vmatpush2.xpose.msra.mxu0 %v1139
        %1246 = vmatprep.subr.mxu0 0.0
        %1247 = vmatpush2.xpose.msra.mxu0 %v1138
        %1248 = vmatprep.subr.mxu0 0.0
        %1249 = vmatpush2.xpose.msra.mxu0 %v1137
        %1250 = vmatprep.subr.mxu0 0.0
        %1251 = vmatpush2.xpose.msra.mxu0 %v1136
        %1252 = vmatprep.subr.mxu0 0.0
        %1253 = vmatpush2.xpose.msra.mxu0 %v1135
        %1254 = vmatprep.mubr.f32.mxu0 0.0
        %1255 = vmatmul.mubr.f32.gmra.mxu0 %v1183
        %v1256 = vpop.f32.mrf.mxu0
        %v1257 = vadd.f32 %v1188, %v1256
        %v1258 = vpop.f32.mrf.mxu0
        %v1259 = vadd.f32 %v1188, %v1258
        %1260 = vdwg.mxu0
        %1261 = vmatprep.subr.mxu0 0.0
        %1262 = vmatpush1.xpose.msra.mxu0 %v1166
        %1263 = vmatprep.subr.mxu0 0.0
        %1264 = vmatpush1.xpose.msra.mxu0 %v1165
        %1265 = vmatprep.subr.mxu0 0.0
        %1266 = vmatpush1.xpose.msra.mxu0 %v1164
        %1267 = vmatprep.subr.mxu0 0.0
        %1268 = vmatpush1.xpose.msra.mxu0 %v1163
        %1269 = vmatprep.subr.mxu0 0.0
        %1270 = vmatpush1.xpose.msra.mxu0 %v1162
        %1271 = vmatprep.subr.mxu0 0.0
        %1272 = vmatpush1.xpose.msra.mxu0 %v1161
        %1273 = vmatprep.subr.mxu0 0.0
        %1274 = vmatpush1.xpose.msra.mxu0 %v1160
        %1275 = vmatprep.subr.mxu0 0.0
        %1276 = vmatpush1.xpose.msra.mxu0 %v1159
        %1277 = vmatprep.subr.mxu0 0.0
        %1278 = vmatpush1.xpose.msra.mxu0 %v1158
        %1279 = vmatprep.subr.mxu0 0.0
        %1280 = vmatpush1.xpose.msra.mxu0 %v1157
        %1281 = vmatprep.subr.mxu0 0.0
        %1282 = vmatpush1.xpose.msra.mxu0 %v1156
        %1283 = vmatprep.subr.mxu0 0.0
        %1284 = vmatpush1.xpose.msra.mxu0 %v1155
        %1285 = vmatprep.subr.mxu0 0.0
        %1286 = vmatpush1.xpose.msra.mxu0 %v1154
        %1287 = vmatprep.subr.mxu0 0.0
        %1288 = vmatpush1.xpose.msra.mxu0 %v1153
        %1289 = vmatprep.subr.mxu0 0.0
        %1290 = vmatpush1.xpose.msra.mxu0 %v1152
        %1291 = vmatprep.subr.mxu0 0.0
        %1292 = vmatpush1.xpose.msra.mxu0 %v1151
        %1293 = vmatprep.subr.mxu0 0.0
        %1294 = vmatpush2.xpose.msra.mxu0 %v1182
        %1295 = vmatprep.subr.mxu0 0.0
        %1296 = vmatpush2.xpose.msra.mxu0 %v1181
        %1297 = vmatprep.subr.mxu0 0.0
        %1298 = vmatpush2.xpose.msra.mxu0 %v1180
        %1299 = vmatprep.subr.mxu0 0.0
        %1300 = vmatpush2.xpose.msra.mxu0 %v1179
        %1301 = vmatprep.subr.mxu0 0.0
        %1302 = vmatpush2.xpose.msra.mxu0 %v1178
        %1303 = vmatprep.subr.mxu0 0.0
        %1304 = vmatpush2.xpose.msra.mxu0 %v1177
        %1305 = vmatprep.subr.mxu0 0.0
        %1306 = vmatpush2.xpose.msra.mxu0 %v1176
        %1307 = vmatprep.subr.mxu0 0.0
        %1308 = vmatpush2.xpose.msra.mxu0 %v1175
        %1309 = vmatprep.subr.mxu0 0.0
        %1310 = vmatpush2.xpose.msra.mxu0 %v1174
        %1311 = vmatprep.subr.mxu0 0.0
        %1312 = vmatpush2.xpose.msra.mxu0 %v1173
        %1313 = vmatprep.subr.mxu0 0.0
        %1314 = vmatpush2.xpose.msra.mxu0 %v1172
        %1315 = vmatprep.subr.mxu0 0.0
        %1316 = vmatpush2.xpose.msra.mxu0 %v1171
        %1317 = vmatprep.subr.mxu0 0.0
        %1318 = vmatpush2.xpose.msra.mxu0 %v1170
        %1319 = vmatprep.subr.mxu0 0.0
        %1320 = vmatpush2.xpose.msra.mxu0 %v1169
        %1321 = vmatprep.subr.mxu0 0.0
        %1322 = vmatpush2.xpose.msra.mxu0 %v1168
        %1323 = vmatprep.subr.mxu0 0.0
        %1324 = vmatpush2.xpose.msra.mxu0 %v1167
        %1325 = vmatprep.mubr.f32.mxu0 0.0
        %1326 = vmatmul.mubr.f32.gmra.mxu0 %v1183
        %v1327 = vpop.f32.mrf.mxu0
        %v1328 = vadd.f32 %v1188, %v1327
        %v1329 = vpop.f32.mrf.mxu0
        %v1330 = vadd.f32 %v1188, %v1329
        %1331 = vdwg.mxu0
        %v1336 = vcombine.low %v1257, %v1259
        %v1337 = vcombine.low %v1328, %v1330
        %v1339 = vunpack.c.l.s4 1966171168
        %v1340 = vunpack.c.0.s8 %v1339
        %v1341 = vlaneseq
        %v1342 = vshrl.u32 %v1341, 7
        %v1343 = vsub.s32 %v1340, %v1342
        %v1344 = vrot.slane %v1336, %v1343
        %v1346 = vunpack.c.l.s4 1966171168
        %v1347 = vunpack.c.0.s8 %v1346
        %v1348 = vlaneseq
        %v1349 = vshrl.u32 %v1348, 7
        %v1350 = vsub.s32 %v1347, %v1349
        %v1351 = vrot.slane %v1337, %v1350
        %v1352 = vcombine.low %v1344, %v1351
        %v1354 = vunpack.c.l.s4 1966171168
        %v1355 = vunpack.c.0.s8 %v1354
        %v1356 = vlaneseq
        %v1357 = vshrl.u32 %v1356, 7
        %v1358 = vsub.s32 %v1355, %v1357
        %v1359 = vrot.slane %v1352, %v1358
        %v1361 = vlaneseq
        %vm1362 = vcmp.ge.s32.totalorder %v1361, 0
        %vm1363 = vcmp.lt.s32.totalorder %v1361, 512
        %vm1364 = vmand %vm1362, %vm1363
        %1365 = vst.msk [vmem:[%s176] sm:$0xf] %vm1364, %v1359
        %s1366 = sand.u32 %s75, 1
        %s1367 = scalar_lea.sflag [#allocation4], %s1366
        %s1368 = sand.u32 %s75, 1
        %s1369 = smul.addr %s1368, 4
        %s1370 = scalar_lea.vmem [#allocation7], %s1369
        // Predicated region
        $region37: #{tpu_custom_call.1} parent=27 // pred_check
          %p1371 = pneg %p85
        $region38: #{tpu_custom_call.1} parent=27 // pred_check_branch
          %1373 = sbr.rel (%p1371) target = $region40
        $region39: #{tpu_custom_call.1} parent=27 // pred_region
          %s1374 = smul.u32 4, %s20
          %s1376 = ssub.s32 64, 64
          %1377 = vsyncadd %s1367, %s1376
          %s1378 = smul.addr %s1374, 16
          %s1379 = scalar_lea.hbm %s2, %s1378
          %s1381 = sshll.u32 %s1370, 4
          %s1382 = int_to_ptr.vmem [resolvable:$true] %s1381
          %1384 = dma.vmem_to_hbm [thread:$0]  %s1382, 64, %s1379, %s1367
        $region40: #{tpu_custom_call.1} parent=27 // pred_fallthru
          _
      $region28: #{tpu_custom_call.1} parent=5 // pred_fallthru
        _
      %p1385 = scmp.le.s32.totalorder 2, %s15
      // Predicated region
      $region41: #{tpu_custom_call.1} parent=5 // pred_check
        %p1386 = pneg %p1385
      $region42: #{tpu_custom_call.1} parent=5 // pred_check_branch
        %1388 = sbr.rel (%p1386) target = $region44
      $region43: #{tpu_custom_call.1} parent=5 // pred_region
        %s1389 = ssub.s32 %s15, 2
        // Predicated region
        $region45: #{tpu_custom_call.1} parent=43 // pred_check
          %p1390 = pneg %p91
        $region46: #{tpu_custom_call.1} parent=43 // pred_check_branch
          %1392 = sbr.rel (%p1390) target = $region48
        $region47: #{tpu_custom_call.1} parent=43 // pred_region
          %s1393 = sand.u32 %s76, 1
          %s1394 = scalar_lea.sflag [#allocation4], %s1393
          %s1395 = sand.u32 %s76, 1
          %s1396 = smul.addr %s1395, 4
          %s1397 = scalar_lea.vmem [#allocation7], %s1396
          %1398 = dma.done %s1394, 64
        $region48: #{tpu_custom_call.1} parent=43 // pred_fallthru
          _
      $region44: #{tpu_custom_call.1} parent=5 // pred_fallthru
        _
    $region6: #{tpu_custom_call.1} parent=1 // loop_footer
      %s19 = sadd.s32 1, %s15
    $region7: #{tpu_custom_call.1} parent=1 // loop_footer_branch
      %14 = sbr.rel target = $region3
    $region8: #{tpu_custom_call.1} parent=1 // loop_exit
      _
    %1399 = vsyncpa [#allocation3], 1
    %s1400 = scalar_lea.sflag [#allocation3], 1
    %1401 = vsyncpa %s1400, 1
    %1402 = vsyncpa [#allocation6], 1
    %1403 = vsyncpa [#allocation4], 1
    %s1404 = scalar_lea.sflag [#allocation4], 1
    %1405 = vsyncpa %s1404, 1

// kernel: tpu_custom_call.1
$region0: #{tpu_custom_call.1}
  #allocation0 [shape = 'u32[]', space=smem, size = 0x4, offset = 0x4, fixed_abs, tag = 'smem constant byte address 0x4 - core index']
  #allocation1 [shape = 'u32[144,128]{1,0:T(1,128)}', space=vmem, size = 0x12000, scoped, tag = 'internal scratch']
  %s0 = inlined_call_operand.hbm [shape: f32[1024,128], index: 0, kind: input, shape index: {}]
  %s1 = inlined_call_operand.hbm [shape: f32[288,128], index: 1, kind: input, shape index: {}]
  %s2 = inlined_call_operand.hbm [shape: f32[1,1024], index: 2, kind: output, shape index: {}]
  %s3 = sld [smem:[#allocation0]]
  $region49: #{tpu_custom_call.1} parent=0
    _
  %s5 = ssub.s32 1, %s3
  %s6 = scalar_select 0, %s5, %s3
  $region1: #{tpu_custom_call.1} parent=0
    #allocation2 [shape = 'u8[524288]{0}', space=vmem, size = 0x80000, scoped, tag = 'input window, operand 0']
    #allocation3 [shape = 's32[2]{0}', space=sflag, size = 0x8, scoped, tag = 'scoped memory for tpu_custom_call.1']
    #allocation4 [shape = 's32[2]{0}', space=sflag, size = 0x8, scoped, tag = 'scoped memory for tpu_custom_call.1']
    #allocation5 [shape = 'u8[147456]{0}', space=vmem, size = 0x24000, scoped, tag = 'input window, operand 1, single buffered']
    #allocation6 [shape = 's32[1]{0}', space=sflag, size = 0x4, scoped, tag = 'scoped memory for tpu_custom_call.1']
    #allocation7 [shape = 'u8[4096]{0}', space=vmem, size = 0x1000, scoped, tag = 'output window, operand 0']
    %7 = vsyncpa [#allocation3], 0
    %s8 = scalar_lea.sflag [#allocation3], 1
    %9 = vsyncpa %s8, 0
    %10 = vsyncpa [#allocation6], 0
    %11 = vsyncpa [#allocation4], 0
    %s12 = scalar_lea.sflag [#allocation4], 1
    %13 = vsyncpa %s12, 0
    loop: start=0, step=1, limit=4
    $region2: #{tpu_custom_call.1} parent=1 // loop_pre_header
      _
    $region3: #{tpu_custom_call.1} parent=1 // loop_header
      %s15 = sphi 0, %s19
      %p16 = scmp.ge.s32.totalorder %s15, 4
      %s25 = sphi 0, %s27
      %s28 = sphi 0, %s25
      %s29 = sphi 0, %s28
      %s45 = sphi 0, %s29
      %s49 = sphi 0, %s49
      %s51 = sphi 0, %s49
      %s52 = sphi 0, %s51
      %s66 = sphi 0, %s52
      %s72 = sphi 0, %s74
      %s75 = sphi 0, %s72
      %s76 = sphi 0, %s75
      %s92 = sphi 0, %s76
    $region4: #{tpu_custom_call.1} parent=1 // loop_header_branch
      %18 = sbr.rel (%p16) target = $region8
    $region5: #{tpu_custom_call.1} parent=1 // loop_body
      %s20 = ssub.s32 %s15, 1
      %s21 = ssub.s32 %s15, 2
      %s22 = sadd.s32 %s15, 1
      %s23 = ssub.s32 %s15, %s22
      %p24 = scmp.eq.s32.totalorder %s23, 0
      %s26 = sadd.s32 %s25, 1
      %s27 = scalar_select %p24, %s25, %s26
      %p30 = pneg %p24
      %p31 = scmp.eq.s32.totalorder %s15, 1
      %p32 = por %p30, %p31
      %p33 = scmp.ne.s32.totalorder %s25, %s28
      %p34 = scmp.eq.s32.totalorder %s15, 0
      %p35 = por %p33, %p34
      %p36 = scmp.ne.s32.totalorder %s25, %s28
      %p37 = scmp.eq.s32.totalorder %s20, 1
      %p38 = por %p36, %p37
      %p39 = scmp.ne.s32.totalorder %s28, %s29
      %p40 = scmp.eq.s32.totalorder %s20, 0
      %p41 = por %p39, %p40
      %p42 = scmp.ne.s32.totalorder %s28, %s29
      %p43 = scmp.eq.s32.totalorder %s21, 1
      %p44 = por %p42, %p43
      %p46 = scmp.ne.s32.totalorder %s29, %s45
      %p47 = scmp.eq.s32.totalorder %s21, 0
      %p48 = por %p46, %p47
      %s50 = sadd.s32 %s49, 1
      %p53 = scmp.eq.s32.totalorder %s15, 1
      %p54 = scmp.ne.s32.totalorder %s49, %s51
      %p55 = scmp.eq.s32.totalorder %s15, 0
      %p56 = por %p54, %p55
      %p57 = scmp.ne.s32.totalorder %s49, %s51
      %p58 = scmp.eq.s32.totalorder %s20, 1
      %p59 = por %p57, %p58
      %p60 = scmp.ne.s32.totalorder %s51, %s52
      %p61 = scmp.eq.s32.totalorder %s20, 0
      %p62 = por %p60, %p61
      %p63 = scmp.ne.s32.totalorder %s51, %s52
      %p64 = scmp.eq.s32.totalorder %s21, 1
      %p65 = por %p63, %p64
      %p67 = scmp.ne.s32.totalorder %s52, %s66
      %p68 = scmp.eq.s32.totalorder %s21, 0
      %p69 = por %p67, %p68
      %s70 = ssub.s32 %s15, %s22
      %p71 = scmp.eq.s32.totalorder %s70, 0
      %s73 = sadd.s32 %s72, 1
      %s74 = scalar_select %p71, %s72, %s73
      %p77 = pneg %p71
      %p78 = scmp.eq.s32.totalorder %s15, 1
      %p79 = por %p77, %p78
      %p80 = scmp.ne.s32.totalorder %s72, %s75
      %p81 = scmp.eq.s32.totalorder %s15, 0
      %p82 = por %p80, %p81
      %p83 = scmp.ne.s32.totalorder %s72, %s75
      %p84 = scmp.eq.s32.totalorder %s20, 1
      %p85 = por %p83, %p84
      %p86 = scmp.ne.s32.totalorder %s75, %s76
      %p87 = scmp.eq.s32.totalorder %s20, 0
      %p88 = por %p86, %p87
      %p89 = scmp.ne.s32.totalorder %s75, %s76
      %p90 = scmp.eq.s32.totalorder %s21, 1
      %p91 = por %p89, %p90
      %p93 = scmp.ne.s32.totalorder %s76, %s92
      %p94 = scmp.eq.s32.totalorder %s21, 0
      %p95 = por %p93, %p94
      %p96 = scmp.le.s32.totalorder 1, %s15
      %p97 = scmp.lt.s32.totalorder %s15, 3
      %p98 = pnand %p96, %p97
      %p99 = pneg %p98
      // Predicated region
      $region9: #{tpu_custom_call.1} parent=5 // pred_check
        _
      $region10: #{tpu_custom_call.1} parent=5 // pred_check_branch
        %101 = sbr.rel (%p98) target = $region12
      $region11: #{tpu_custom_call.1} parent=5 // pred_region
        %s102 = ssub.s32 %s15, 1
        // Predicated region
        $region13: #{tpu_custom_call.1} parent=11 // pred_check
          %p103 = pneg %p62
        $region14: #{tpu_custom_call.1} parent=11 // pred_check_branch
          %105 = sbr.rel (%p103) target = $region16
        $region15: #{tpu_custom_call.1} parent=11 // pred_region
          %s107 = ssub.s32 4608, 4608
          %108 = vsyncadd [#allocation6], %s107
          %s109 = sshll.u32 [#allocation5], 4
          %s110 = int_to_ptr.vmem [resolvable:$true] %s109
          %115 = dma.hbm_to_vmem [thread:$0]  %s1, 4608, %s110, [#allocation6], 128, 128, 8
        $region16: #{tpu_custom_call.1} parent=11 // pred_fallthru
          _
      $region12: #{tpu_custom_call.1} parent=5 // pred_fallthru
        _
      %p116 = scmp.lt.s32.totalorder %s15, 2
      // Predicated region
      $region17: #{tpu_custom_call.1} parent=5 // pred_check
        %p117 = pneg %p116
      $region18: #{tpu_custom_call.1} parent=5 // pred_check_branch
        %119 = sbr.rel (%p117) target = $region20
      $region19: #{tpu_custom_call.1} parent=5 // pred_region
        // Predicated region
        $region21: #{tpu_custom_call.1} parent=19 // pred_check
          %p120 = pneg %p35
        $region22: #{tpu_custom_call.1} parent=19 // pred_check_branch
          %122 = sbr.rel (%p120) target = $region24
        $region23: #{tpu_custom_call.1} parent=19 // pred_region
          %s123 = sand.u32 %s25, 1
          %s124 = scalar_lea.sflag [#allocation3], %s123
          %s125 = sand.u32 %s25, 1
          %s126 = smul.addr %s125, 512
          %s127 = scalar_lea.vmem [#allocation2], %s126
          %s128 = smul.u32 64, %s15
          %s130 = ssub.s32 8192, 8192
          %131 = vsyncadd %s124, %s130
          %s132 = smul.addr %s128, 128
          %s133 = scalar_lea.hbm %s0, %s132
          %s134 = sshll.u32 %s127, 4
          %s135 = int_to_ptr.vmem [resolvable:$true] %s134
          %140 = dma.hbm_to_vmem [thread:$0]  %s133, 8192, %s135, %s124, 128, 128, 8
        $region24: #{tpu_custom_call.1} parent=19 // pred_fallthru
          _
      $region20: #{tpu_custom_call.1} parent=5 // pred_fallthru
        _
      %p141 = scmp.le.s32.totalorder 1, %s15
      %p142 = scmp.lt.s32.totalorder %s15, 3
      %p143 = pnand %p141, %p142
      %p144 = pneg %p143
      // Predicated region
      $region25: #{tpu_custom_call.1} parent=5 // pred_check
        _
      $region26: #{tpu_custom_call.1} parent=5 // pred_check_branch
        %146 = sbr.rel (%p143) target = $region28
      $region27: #{tpu_custom_call.1} parent=5 // pred_region
        %s147 = ssub.s32 %s15, 1
        %s148 = sand.u32 %s28, 1
        %s149 = scalar_lea.sflag [#allocation3], %s148
        %s150 = sand.u32 %s28, 1
        %s151 = smul.addr %s150, 512
        %s152 = scalar_lea.vmem [#allocation2], %s151
        // Predicated region
        $region29: #{tpu_custom_call.1} parent=27 // pred_check
          %p153 = pneg %p41
        $region30: #{tpu_custom_call.1} parent=27 // pred_check_branch
          %155 = sbr.rel (%p153) target = $region32
        $region31: #{tpu_custom_call.1} parent=27 // pred_region
          %156 = dma.done %s149, 8192
        $region32: #{tpu_custom_call.1} parent=27 // pred_fallthru
          _
        // Predicated region
        $region33: #{tpu_custom_call.1} parent=27 // pred_check
          %p157 = pneg %p62
        $region34: #{tpu_custom_call.1} parent=27 // pred_check_branch
          %159 = sbr.rel (%p157) target = $region36
        $region35: #{tpu_custom_call.1} parent=27 // pred_region
          %160 = dma.done [#allocation6], 4608
        $region36: #{tpu_custom_call.1} parent=27 // pred_fallthru
          _
        %s161 = sand.u32 %s28, 1
        %s162 = scalar_lea.sflag [#allocation3], %s161
        %s163 = sand.u32 %s28, 1
        %s164 = smul.addr %s163, 512
        %s165 = scalar_lea.vmem [#allocation2], %s164
        %p166 = pneg %p41
        %p167 = pneg %p38
        %p168 = pneg %p62
        %p169 = pneg %p59
        %p170 = pneg %p88
        %p171 = pneg %p85
        %s172 = sand.u32 %s75, 1
        %s173 = scalar_lea.sflag [#allocation4], %s172
        %s174 = sand.u32 %s75, 1
        %s175 = smul.addr %s174, 4
        %s176 = scalar_lea.vmem [#allocation7], %s175
        %s177 = smul.u32 64, %s20
        %s178 = smul.u32 4, %s20
        %v179 = vld [vmem:[%s152] sm:$0xff]
        %v180 = vld [vmem:[%s152 + $0x8] sm:$0xff]
        %v181 = vld [vmem:[%s152 + $0x10] sm:$0xff]
        %v182 = vld [vmem:[%s152 + $0x18] sm:$0xff]
        %v183 = vld [vmem:[%s152 + $0x20] sm:$0xff]
        %v184 = vld [vmem:[%s152 + $0x28] sm:$0xff]
        %v185 = vld [vmem:[%s152 + $0x30] sm:$0xff]
        %v186 = vld [vmem:[%s152 + $0x38] sm:$0xff]
        %v187 = vld [vmem:[%s152 + $0x40] sm:$0xff]
        %v188 = vld [vmem:[%s152 + $0x48] sm:$0xff]
        %v189 = vld [vmem:[%s152 + $0x50] sm:$0xff]
        %v190 = vld [vmem:[%s152 + $0x58] sm:$0xff]
        %v191 = vld [vmem:[%s152 + $0x60] sm:$0xff]
        %v192 = vld [vmem:[%s152 + $0x68] sm:$0xff]
        %v193 = vld [vmem:[%s152 + $0x70] sm:$0xff]
        %v194 = vld [vmem:[%s152 + $0x78] sm:$0xff]
        %v195 = vld [vmem:[%s152 + $0x80] sm:$0xff]
        %v196 = vld [vmem:[%s152 + $0x88] sm:$0xff]
        %v197 = vld [vmem:[%s152 + $0x90] sm:$0xff]
        %v198 = vld [vmem:[%s152 + $0x98] sm:$0xff]
        %v199 = vld [vmem:[%s152 + $0xa0] sm:$0xff]
        %v200 = vld [vmem:[%s152 + $0xa8] sm:$0xff]
        %v201 = vld [vmem:[%s152 + $0xb0] sm:$0xff]
        %v202 = vld [vmem:[%s152 + $0xb8] sm:$0xff]
        %v203 = vld [vmem:[%s152 + $0xc0] sm:$0xff]
        %v204 = vld [vmem:[%s152 + $0xc8] sm:$0xff]
        %v205 = vld [vmem:[%s152 + $0xd0] sm:$0xff]
        %v206 = vld [vmem:[%s152 + $0xd8] sm:$0xff]
        %v207 = vld [vmem:[%s152 + $0xe0] sm:$0xff]
        %v208 = vld [vmem:[%s152 + $0xe8] sm:$0xff]
        %v209 = vld [vmem:[%s152 + $0xf0] sm:$0xff]
        %v210 = vld [vmem:[%s152 + $0xf8] sm:$0xff]
        %v211 = vld [vmem:[%s152 + $0x100] sm:$0xff]
        %v212 = vld [vmem:[%s152 + $0x108] sm:$0xff]
        %v213 = vld [vmem:[%s152 + $0x110] sm:$0xff]
        %v214 = vld [vmem:[%s152 + $0x118] sm:$0xff]
        %v215 = vld [vmem:[%s152 + $0x120] sm:$0xff]
        %v216 = vld [vmem:[%s152 + $0x128] sm:$0xff]
        %v217 = vld [vmem:[%s152 + $0x130] sm:$0xff]
        %v218 = vld [vmem:[%s152 + $0x138] sm:$0xff]
        %v219 = vld [vmem:[%s152 + $0x140] sm:$0xff]
        %v220 = vld [vmem:[%s152 + $0x148] sm:$0xff]
        %v221 = vld [vmem:[%s152 + $0x150] sm:$0xff]
        %v222 = vld [vmem:[%s152 + $0x158] sm:$0xff]
        %v223 = vld [vmem:[%s152 + $0x160] sm:$0xff]
        %v224 = vld [vmem:[%s152 + $0x168] sm:$0xff]
        %v225 = vld [vmem:[%s152 + $0x170] sm:$0xff]
        %v226 = vld [vmem:[%s152 + $0x178] sm:$0xff]
        %v227 = vld [vmem:[%s152 + $0x180] sm:$0xff]
        %v228 = vld [vmem:[%s152 + $0x188] sm:$0xff]
        %v229 = vld [vmem:[%s152 + $0x190] sm:$0xff]
        %v230 = vld [vmem:[%s152 + $0x198] sm:$0xff]
        %v231 = vld [vmem:[%s152 + $0x1a0] sm:$0xff]
        %v232 = vld [vmem:[%s152 + $0x1a8] sm:$0xff]
        %v233 = vld [vmem:[%s152 + $0x1b0] sm:$0xff]
        %v234 = vld [vmem:[%s152 + $0x1b8] sm:$0xff]
        %v235 = vld [vmem:[%s152 + $0x1c0] sm:$0xff]
        %v236 = vld [vmem:[%s152 + $0x1c8] sm:$0xff]
        %v237 = vld [vmem:[%s152 + $0x1d0] sm:$0xff]
        %v238 = vld [vmem:[%s152 + $0x1d8] sm:$0xff]
        %v239 = vld [vmem:[%s152 + $0x1e0] sm:$0xff]
        %v240 = vld [vmem:[%s152 + $0x1e8] sm:$0xff]
        %v241 = vld [vmem:[%s152 + $0x1f0] sm:$0xff]
        %v242 = vld [vmem:[%s152 + $0x1f8] sm:$0xff]
        %v243 = vld [vmem:[#allocation5] sm:$0xff]
        %v244 = vld [vmem:[#allocation5 + $0x8] sm:$0xff]
        %v245 = vld [vmem:[#allocation5 + $0x10] sm:$0xff]
        %v246 = vld [vmem:[#allocation5 + $0x18] sm:$0xff]
        %v247 = vld [vmem:[#allocation5 + $0x20] sm:$0xff]
        %v248 = vld [vmem:[#allocation5 + $0x28] sm:$0xff]
        %v249 = vld [vmem:[#allocation5 + $0x30] sm:$0xff]
        %v250 = vld [vmem:[#allocation5 + $0x38] sm:$0xff]
        %v251 = vld [vmem:[#allocation5 + $0x40] sm:$0xff]
        %v252 = vld [vmem:[#allocation5 + $0x48] sm:$0xff]
        %v253 = vld [vmem:[#allocation5 + $0x50] sm:$0xff]
        %v254 = vld [vmem:[#allocation5 + $0x58] sm:$0xff]
        %v255 = vld [vmem:[#allocation5 + $0x60] sm:$0xff]
        %v256 = vld [vmem:[#allocation5 + $0x68] sm:$0xff]
        %v257 = vld [vmem:[#allocation5 + $0x70] sm:$0xff]
        %v258 = vld [vmem:[#allocation5 + $0x78] sm:$0xff]
        %v259 = vld [vmem:[#allocation5 + $0x80] sm:$0x1]
        %v260 = vlaneseq
        %v261 = vshrl.u32 %v260, 7
        %v262 = vsub.s32 0, %v261
        %v263 = vrot.slane %v259, %v262
        %264 = vmatprep.subr.mxu0 0.0
        %265 = vmatpush1.msra.mxu0 %v258
        %266 = vmatprep.subr.mxu0 0.0
        %267 = vmatpush1.msra.mxu0 %v257
        %268 = vmatprep.subr.mxu0 0.0
        %269 = vmatpush1.msra.mxu0 %v256
        %270 = vmatprep.subr.mxu0 0.0
        %271 = vmatpush1.msra.mxu0 %v255
        %272 = vmatprep.subr.mxu0 0.0
        %273 = vmatpush1.msra.mxu0 %v254
        %274 = vmatprep.subr.mxu0 0.0
        %275 = vmatpush1.msra.mxu0 %v253
        %276 = vmatprep.subr.mxu0 0.0
        %277 = vmatpush1.msra.mxu0 %v252
        %278 = vmatprep.subr.mxu0 0.0
        %279 = vmatpush1.msra.mxu0 %v251
        %280 = vmatprep.subr.mxu0 0.0
        %281 = vmatpush1.msra.mxu0 %v250
        %282 = vmatprep.subr.mxu0 0.0
        %283 = vmatpush1.msra.mxu0 %v249
        %284 = vmatprep.subr.mxu0 0.0
        %285 = vmatpush1.msra.mxu0 %v248
        %286 = vmatprep.subr.mxu0 0.0
        %287 = vmatpush1.msra.mxu0 %v247
        %288 = vmatprep.subr.mxu0 0.0
        %289 = vmatpush1.msra.mxu0 %v246
        %290 = vmatprep.subr.mxu0 0.0
        %291 = vmatpush1.msra.mxu0 %v245
        %292 = vmatprep.subr.mxu0 0.0
        %293 = vmatpush1.msra.mxu0 %v244
        %294 = vmatprep.subr.mxu0 0.0
        %295 = vmatpush1.msra.mxu0 %v243
        %296 = vmatprep.subr.mxu0 0.0
        %297 = vmatpush2.msra.mxu0 0.0
        %298 = vmatprep.subr.mxu0 0.0
        %299 = vmatpush2.msra.mxu0 0.0
        %300 = vmatprep.subr.mxu0 0.0
        %301 = vmatpush2.msra.mxu0 0.0
        %302 = vmatprep.subr.mxu0 0.0
        %303 = vmatpush2.msra.mxu0 0.0
        %304 = vmatprep.subr.mxu0 0.0
        %305 = vmatpush2.msra.mxu0 0.0
        %306 = vmatprep.subr.mxu0 0.0
        %307 = vmatpush2.msra.mxu0 0.0
        %308 = vmatprep.subr.mxu0 0.0
        %309 = vmatpush2.msra.mxu0 0.0
        %310 = vmatprep.subr.mxu0 0.0
        %311 = vmatpush2.msra.mxu0 0.0
        %312 = vmatprep.subr.mxu0 0.0
        %313 = vmatpush2.msra.mxu0 0.0
        %314 = vmatprep.subr.mxu0 0.0
        %315 = vmatpush2.msra.mxu0 0.0
        %316 = vmatprep.subr.mxu0 0.0
        %317 = vmatpush2.msra.mxu0 0.0
        %318 = vmatprep.subr.mxu0 0.0
        %319 = vmatpush2.msra.mxu0 0.0
        %320 = vmatprep.subr.mxu0 0.0
        %321 = vmatpush2.msra.mxu0 0.0
        %322 = vmatprep.subr.mxu0 0.0
        %323 = vmatpush2.msra.mxu0 0.0
        %324 = vmatprep.subr.mxu0 0.0
        %325 = vmatpush2.msra.mxu0 0.0
        %326 = vmatprep.subr.mxu0 0.0
        %327 = vmatpush2.msra.mxu0 0.0
        %328 = vmatprep.mubr.f32.mxu0 0.0
        %329 = vmatmul.mubr.f32.gmra.mxu0 %v179
        %v330 = vpop.f32.mrf.mxu0
        %v331 = vadd.f32 %v263, %v330
        %v332 = vpop.f32.mrf.mxu0
        %333 = vmatprep.mubr.f32.mxu0 0.0
        %334 = vmatmul.mubr.f32.gmra.mxu0 %v180
        %v335 = vpop.f32.mrf.mxu0
        %v336 = vadd.f32 %v263, %v335
        %v337 = vpop.f32.mrf.mxu0
        %338 = vmatprep.mubr.f32.mxu0 0.0
        %339 = vmatmul.mubr.f32.gmra.mxu0 %v181
        %v340 = vpop.f32.mrf.mxu0
        %v341 = vadd.f32 %v263, %v340
        %v342 = vpop.f32.mrf.mxu0
        %343 = vmatprep.mubr.f32.mxu0 0.0
        %344 = vmatmul.mubr.f32.gmra.mxu0 %v182
        %v345 = vpop.f32.mrf.mxu0
        %v346 = vadd.f32 %v263, %v345
        %v347 = vpop.f32.mrf.mxu0
        %348 = vmatprep.mubr.f32.mxu0 0.0
        %349 = vmatmul.mubr.f32.gmra.mxu0 %v183
        %v350 = vpop.f32.mrf.mxu0
        %v351 = vadd.f32 %v263, %v350
        %v352 = vpop.f32.mrf.mxu0
        %353 = vmatprep.mubr.f32.mxu0 0.0
        %354 = vmatmul.mubr.f32.gmra.mxu0 %v184
        %v355 = vpop.f32.mrf.mxu0
        %v356 = vadd.f32 %v263, %v355
        %v357 = vpop.f32.mrf.mxu0
        %358 = vmatprep.mubr.f32.mxu0 0.0
        %359 = vmatmul.mubr.f32.gmra.mxu0 %v185
        %v360 = vpop.f32.mrf.mxu0
        %v361 = vadd.f32 %v263, %v360
        %v362 = vpop.f32.mrf.mxu0
        %363 = vmatprep.mubr.f32.mxu0 0.0
        %364 = vmatmul.mubr.f32.gmra.mxu0 %v186
        %v365 = vpop.f32.mrf.mxu0
        %v366 = vadd.f32 %v263, %v365
        %v367 = vpop.f32.mrf.mxu0
        %368 = vmatprep.mubr.f32.mxu0 0.0
        %369 = vmatmul.mubr.f32.gmra.mxu0 %v187
        %v370 = vpop.f32.mrf.mxu0
        %v371 = vadd.f32 %v263, %v370
        %v372 = vpop.f32.mrf.mxu0
        %373 = vmatprep.mubr.f32.mxu0 0.0
        %374 = vmatmul.mubr.f32.gmra.mxu0 %v188
        %v375 = vpop.f32.mrf.mxu0
        %v376 = vadd.f32 %v263, %v375
        %v377 = vpop.f32.mrf.mxu0
        %378 = vmatprep.mubr.f32.mxu0 0.0
        %379 = vmatmul.mubr.f32.gmra.mxu0 %v189
        %v380 = vpop.f32.mrf.mxu0
        %v381 = vadd.f32 %v263, %v380
        %v382 = vpop.f32.mrf.mxu0
        %383 = vmatprep.mubr.f32.mxu0 0.0
        %384 = vmatmul.mubr.f32.gmra.mxu0 %v190
        %v385 = vpop.f32.mrf.mxu0
        %v386 = vadd.f32 %v263, %v385
        %v387 = vpop.f32.mrf.mxu0
        %388 = vmatprep.mubr.f32.mxu0 0.0
        %389 = vmatmul.mubr.f32.gmra.mxu0 %v191
        %v390 = vpop.f32.mrf.mxu0
        %v391 = vadd.f32 %v263, %v390
        %v392 = vpop.f32.mrf.mxu0
        %393 = vmatprep.mubr.f32.mxu0 0.0
        %394 = vmatmul.mubr.f32.gmra.mxu0 %v192
        %v395 = vpop.f32.mrf.mxu0
        %v396 = vadd.f32 %v263, %v395
        %v397 = vpop.f32.mrf.mxu0
        %398 = vmatprep.mubr.f32.mxu0 0.0
        %399 = vmatmul.mubr.f32.gmra.mxu0 %v193
        %v400 = vpop.f32.mrf.mxu0
        %v401 = vadd.f32 %v263, %v400
        %v402 = vpop.f32.mrf.mxu0
        %403 = vmatprep.mubr.f32.mxu0 0.0
        %404 = vmatmul.mubr.f32.gmra.mxu0 %v194
        %v405 = vpop.f32.mrf.mxu0
        %v406 = vadd.f32 %v263, %v405
        %v407 = vpop.f32.mrf.mxu0
        %408 = vmatprep.mubr.f32.mxu0 0.0
        %409 = vmatmul.mubr.f32.gmra.mxu0 %v195
        %v410 = vpop.f32.mrf.mxu0
        %v411 = vadd.f32 %v263, %v410
        %v412 = vpop.f32.mrf.mxu0
        %413 = vmatprep.mubr.f32.mxu0 0.0
        %414 = vmatmul.mubr.f32.gmra.mxu0 %v196
        %v415 = vpop.f32.mrf.mxu0
        %v416 = vadd.f32 %v263, %v415
        %v417 = vpop.f32.mrf.mxu0
        %418 = vmatprep.mubr.f32.mxu0 0.0
        %419 = vmatmul.mubr.f32.gmra.mxu0 %v197
        %v420 = vpop.f32.mrf.mxu0
        %v421 = vadd.f32 %v263, %v420
        %v422 = vpop.f32.mrf.mxu0
        %423 = vmatprep.mubr.f32.mxu0 0.0
        %424 = vmatmul.mubr.f32.gmra.mxu0 %v198
        %v425 = vpop.f32.mrf.mxu0
        %v426 = vadd.f32 %v263, %v425
        %v427 = vpop.f32.mrf.mxu0
        %428 = vmatprep.mubr.f32.mxu0 0.0
        %429 = vmatmul.mubr.f32.gmra.mxu0 %v199
        %v430 = vpop.f32.mrf.mxu0
        %v431 = vadd.f32 %v263, %v430
        %v432 = vpop.f32.mrf.mxu0
        %433 = vmatprep.mubr.f32.mxu0 0.0
        %434 = vmatmul.mubr.f32.gmra.mxu0 %v200
        %v435 = vpop.f32.mrf.mxu0
        %v436 = vadd.f32 %v263, %v435
        %v437 = vpop.f32.mrf.mxu0
        %438 = vmatprep.mubr.f32.mxu0 0.0
        %439 = vmatmul.mubr.f32.gmra.mxu0 %v201
        %v440 = vpop.f32.mrf.mxu0
        %v441 = vadd.f32 %v263, %v440
        %v442 = vpop.f32.mrf.mxu0
        %443 = vmatprep.mubr.f32.mxu0 0.0
        %444 = vmatmul.mubr.f32.gmra.mxu0 %v202
        %v445 = vpop.f32.mrf.mxu0
        %v446 = vadd.f32 %v263, %v445
        %v447 = vpop.f32.mrf.mxu0
        %448 = vmatprep.mubr.f32.mxu0 0.0
        %449 = vmatmul.mubr.f32.gmra.mxu0 %v203
        %v450 = vpop.f32.mrf.mxu0
        %v451 = vadd.f32 %v263, %v450
        %v452 = vpop.f32.mrf.mxu0
        %453 = vmatprep.mubr.f32.mxu0 0.0
        %454 = vmatmul.mubr.f32.gmra.mxu0 %v204
        %v455 = vpop.f32.mrf.mxu0
        %v456 = vadd.f32 %v263, %v455
        %v457 = vpop.f32.mrf.mxu0
        %458 = vmatprep.mubr.f32.mxu0 0.0
        %459 = vmatmul.mubr.f32.gmra.mxu0 %v205
        %v460 = vpop.f32.mrf.mxu0
        %v461 = vadd.f32 %v263, %v460
        %v462 = vpop.f32.mrf.mxu0
        %463 = vmatprep.mubr.f32.mxu0 0.0
        %464 = vmatmul.mubr.f32.gmra.mxu0 %v206
        %v465 = vpop.f32.mrf.mxu0
        %v466 = vadd.f32 %v263, %v465
        %v467 = vpop.f32.mrf.mxu0
        %468 = vmatprep.mubr.f32.mxu0 0.0
        %469 = vmatmul.mubr.f32.gmra.mxu0 %v207
        %v470 = vpop.f32.mrf.mxu0
        %v471 = vadd.f32 %v263, %v470
        %v472 = vpop.f32.mrf.mxu0
        %473 = vmatprep.mubr.f32.mxu0 0.0
        %474 = vmatmul.mubr.f32.gmra.mxu0 %v208
        %v475 = vpop.f32.mrf.mxu0
        %v476 = vadd.f32 %v263, %v475
        %v477 = vpop.f32.mrf.mxu0
        %478 = vmatprep.mubr.f32.mxu0 0.0
        %479 = vmatmul.mubr.f32.gmra.mxu0 %v209
        %v480 = vpop.f32.mrf.mxu0
        %v481 = vadd.f32 %v263, %v480
        %v482 = vpop.f32.mrf.mxu0
        %483 = vmatprep.mubr.f32.mxu0 0.0
        %484 = vmatmul.mubr.f32.gmra.mxu0 %v210
        %v485 = vpop.f32.mrf.mxu0
        %v486 = vadd.f32 %v263, %v485
        %v487 = vpop.f32.mrf.mxu0
        %488 = vmatprep.mubr.f32.mxu0 0.0
        %489 = vmatmul.mubr.f32.gmra.mxu0 %v211
        %v490 = vpop.f32.mrf.mxu0
        %v491 = vadd.f32 %v263, %v490
        %v492 = vpop.f32.mrf.mxu0
        %493 = vmatprep.mubr.f32.mxu0 0.0
        %494 = vmatmul.mubr.f32.gmra.mxu0 %v212
        %v495 = vpop.f32.mrf.mxu0
        %v496 = vadd.f32 %v263, %v495
        %v497 = vpop.f32.mrf.mxu0
        %498 = vmatprep.mubr.f32.mxu0 0.0
        %499 = vmatmul.mubr.f32.gmra.mxu0 %v213
        %v500 = vpop.f32.mrf.mxu0
        %v501 = vadd.f32 %v263, %v500
        %v502 = vpop.f32.mrf.mxu0
        %503 = vmatprep.mubr.f32.mxu0 0.0
        %504 = vmatmul.mubr.f32.gmra.mxu0 %v214
        %v505 = vpop.f32.mrf.mxu0
        %v506 = vadd.f32 %v263, %v505
        %v507 = vpop.f32.mrf.mxu0
        %508 = vmatprep.mubr.f32.mxu0 0.0
        %509 = vmatmul.mubr.f32.gmra.mxu0 %v215
        %v510 = vpop.f32.mrf.mxu0
        %v511 = vadd.f32 %v263, %v510
        %v512 = vpop.f32.mrf.mxu0
        %513 = vmatprep.mubr.f32.mxu0 0.0
        %514 = vmatmul.mubr.f32.gmra.mxu0 %v216
        %v515 = vpop.f32.mrf.mxu0
        %v516 = vadd.f32 %v263, %v515
        %v517 = vpop.f32.mrf.mxu0
        %518 = vmatprep.mubr.f32.mxu0 0.0
        %519 = vmatmul.mubr.f32.gmra.mxu0 %v217
        %v520 = vpop.f32.mrf.mxu0
        %v521 = vadd.f32 %v263, %v520
        %v522 = vpop.f32.mrf.mxu0
        %523 = vmatprep.mubr.f32.mxu0 0.0
        %524 = vmatmul.mubr.f32.gmra.mxu0 %v218
        %v525 = vpop.f32.mrf.mxu0
        %v526 = vadd.f32 %v263, %v525
        %v527 = vpop.f32.mrf.mxu0
        %528 = vmatprep.mubr.f32.mxu0 0.0
        %529 = vmatmul.mubr.f32.gmra.mxu0 %v219
        %v530 = vpop.f32.mrf.mxu0
        %v531 = vadd.f32 %v263, %v530
        %v532 = vpop.f32.mrf.mxu0
        %533 = vmatprep.mubr.f32.mxu0 0.0
        %534 = vmatmul.mubr.f32.gmra.mxu0 %v220
        %v535 = vpop.f32.mrf.mxu0
        %v536 = vadd.f32 %v263, %v535
        %v537 = vpop.f32.mrf.mxu0
        %538 = vmatprep.mubr.f32.mxu0 0.0
        %539 = vmatmul.mubr.f32.gmra.mxu0 %v221
        %v540 = vpop.f32.mrf.mxu0
        %v541 = vadd.f32 %v263, %v540
        %v542 = vpop.f32.mrf.mxu0
        %543 = vmatprep.mubr.f32.mxu0 0.0
        %544 = vmatmul.mubr.f32.gmra.mxu0 %v222
        %v545 = vpop.f32.mrf.mxu0
        %v546 = vadd.f32 %v263, %v545
        %v547 = vpop.f32.mrf.mxu0
        %548 = vmatprep.mubr.f32.mxu0 0.0
        %549 = vmatmul.mubr.f32.gmra.mxu0 %v223
        %v550 = vpop.f32.mrf.mxu0
        %v551 = vadd.f32 %v263, %v550
        %v552 = vpop.f32.mrf.mxu0
        %553 = vmatprep.mubr.f32.mxu0 0.0
        %554 = vmatmul.mubr.f32.gmra.mxu0 %v224
        %v555 = vpop.f32.mrf.mxu0
        %v556 = vadd.f32 %v263, %v555
        %v557 = vpop.f32.mrf.mxu0
        %558 = vmatprep.mubr.f32.mxu0 0.0
        %559 = vmatmul.mubr.f32.gmra.mxu0 %v225
        %v560 = vpop.f32.mrf.mxu0
        %v561 = vadd.f32 %v263, %v560
        %v562 = vpop.f32.mrf.mxu0
        %563 = vmatprep.mubr.f32.mxu0 0.0
        %564 = vmatmul.mubr.f32.gmra.mxu0 %v226
        %v565 = vpop.f32.mrf.mxu0
        %v566 = vadd.f32 %v263, %v565
        %v567 = vpop.f32.mrf.mxu0
        %568 = vmatprep.mubr.f32.mxu0 0.0
        %569 = vmatmul.mubr.f32.gmra.mxu0 %v227
        %v570 = vpop.f32.mrf.mxu0
        %v571 = vadd.f32 %v263, %v570
        %v572 = vpop.f32.mrf.mxu0
        %573 = vmatprep.mubr.f32.mxu0 0.0
        %574 = vmatmul.mubr.f32.gmra.mxu0 %v228
        %v575 = vpop.f32.mrf.mxu0
        %v576 = vadd.f32 %v263, %v575
        %v577 = vpop.f32.mrf.mxu0
        %578 = vmatprep.mubr.f32.mxu0 0.0
        %579 = vmatmul.mubr.f32.gmra.mxu0 %v229
        %v580 = vpop.f32.mrf.mxu0
        %v581 = vadd.f32 %v263, %v580
        %v582 = vpop.f32.mrf.mxu0
        %583 = vmatprep.mubr.f32.mxu0 0.0
        %584 = vmatmul.mubr.f32.gmra.mxu0 %v230
        %v585 = vpop.f32.mrf.mxu0
        %v586 = vadd.f32 %v263, %v585
        %v587 = vpop.f32.mrf.mxu0
        %588 = vmatprep.mubr.f32.mxu0 0.0
        %589 = vmatmul.mubr.f32.gmra.mxu0 %v231
        %v590 = vpop.f32.mrf.mxu0
        %v591 = vadd.f32 %v263, %v590
        %v592 = vpop.f32.mrf.mxu0
        %593 = vmatprep.mubr.f32.mxu0 0.0
        %594 = vmatmul.mubr.f32.gmra.mxu0 %v232
        %v595 = vpop.f32.mrf.mxu0
        %v596 = vadd.f32 %v263, %v595
        %v597 = vpop.f32.mrf.mxu0
        %598 = vmatprep.mubr.f32.mxu0 0.0
        %599 = vmatmul.mubr.f32.gmra.mxu0 %v233
        %v600 = vpop.f32.mrf.mxu0
        %v601 = vadd.f32 %v263, %v600
        %v602 = vpop.f32.mrf.mxu0
        %603 = vmatprep.mubr.f32.mxu0 0.0
        %604 = vmatmul.mubr.f32.gmra.mxu0 %v234
        %v605 = vpop.f32.mrf.mxu0
        %v606 = vadd.f32 %v263, %v605
        %v607 = vpop.f32.mrf.mxu0
        %608 = vmatprep.mubr.f32.mxu0 0.0
        %609 = vmatmul.mubr.f32.gmra.mxu0 %v235
        %v610 = vpop.f32.mrf.mxu0
        %v611 = vadd.f32 %v263, %v610
        %v612 = vpop.f32.mrf.mxu0
        %613 = vmatprep.mubr.f32.mxu0 0.0
        %614 = vmatmul.mubr.f32.gmra.mxu0 %v236
        %v615 = vpop.f32.mrf.mxu0
        %v616 = vadd.f32 %v263, %v615
        %v617 = vpop.f32.mrf.mxu0
        %618 = vmatprep.mubr.f32.mxu0 0.0
        %619 = vmatmul.mubr.f32.gmra.mxu0 %v237
        %v620 = vpop.f32.mrf.mxu0
        %v621 = vadd.f32 %v263, %v620
        %v622 = vpop.f32.mrf.mxu0
        %623 = vmatprep.mubr.f32.mxu0 0.0
        %624 = vmatmul.mubr.f32.gmra.mxu0 %v238
        %v625 = vpop.f32.mrf.mxu0
        %v626 = vadd.f32 %v263, %v625
        %v627 = vpop.f32.mrf.mxu0
        %628 = vmatprep.mubr.f32.mxu0 0.0
        %629 = vmatmul.mubr.f32.gmra.mxu0 %v239
        %v630 = vpop.f32.mrf.mxu0
        %v631 = vadd.f32 %v263, %v630
        %v632 = vpop.f32.mrf.mxu0
        %633 = vmatprep.mubr.f32.mxu0 0.0
        %634 = vmatmul.mubr.f32.gmra.mxu0 %v240
        %v635 = vpop.f32.mrf.mxu0
        %v636 = vadd.f32 %v263, %v635
        %v637 = vpop.f32.mrf.mxu0
        %638 = vmatprep.mubr.f32.mxu0 0.0
        %639 = vmatmul.mubr.f32.gmra.mxu0 %v241
        %v640 = vpop.f32.mrf.mxu0
        %v641 = vadd.f32 %v263, %v640
        %v642 = vpop.f32.mrf.mxu0
        %643 = vmatprep.mubr.f32.mxu0 0.0
        %644 = vmatmul.mubr.f32.gmra.mxu0 %v242
        %v645 = vpop.f32.mrf.mxu0
        %v646 = vadd.f32 %v263, %v645
        %v647 = vpop.f32.mrf.mxu0
        %648 = vdwg.mxu0
        %v649 = vmax.f32 %v331, 0.0
        %v650 = vmax.f32 %v336, 0.0
        %v651 = vmax.f32 %v341, 0.0
        %v652 = vmax.f32 %v346, 0.0
        %v653 = vmax.f32 %v351, 0.0
        %v654 = vmax.f32 %v356, 0.0
        %v655 = vmax.f32 %v361, 0.0
        %v656 = vmax.f32 %v366, 0.0
        %v657 = vmax.f32 %v371, 0.0
        %v658 = vmax.f32 %v376, 0.0
        %v659 = vmax.f32 %v381, 0.0
        %v660 = vmax.f32 %v386, 0.0
        %v661 = vmax.f32 %v391, 0.0
        %v662 = vmax.f32 %v396, 0.0
        %v663 = vmax.f32 %v401, 0.0
        %v664 = vmax.f32 %v406, 0.0
        %v665 = vmax.f32 %v411, 0.0
        %v666 = vmax.f32 %v416, 0.0
        %v667 = vmax.f32 %v421, 0.0
        %v668 = vmax.f32 %v426, 0.0
        %v669 = vmax.f32 %v431, 0.0
        %v670 = vmax.f32 %v436, 0.0
        %v671 = vmax.f32 %v441, 0.0
        %v672 = vmax.f32 %v446, 0.0
        %v673 = vmax.f32 %v451, 0.0
        %v674 = vmax.f32 %v456, 0.0
        %v675 = vmax.f32 %v461, 0.0
        %v676 = vmax.f32 %v466, 0.0
        %v677 = vmax.f32 %v471, 0.0
        %v678 = vmax.f32 %v476, 0.0
        %v679 = vmax.f32 %v481, 0.0
        %v680 = vmax.f32 %v486, 0.0
        %v681 = vmax.f32 %v491, 0.0
        %v682 = vmax.f32 %v496, 0.0
        %v683 = vmax.f32 %v501, 0.0
        %v684 = vmax.f32 %v506, 0.0
        %v685 = vmax.f32 %v511, 0.0
        %v686 = vmax.f32 %v516, 0.0
        %v687 = vmax.f32 %v521, 0.0
        %v688 = vmax.f32 %v526, 0.0
        %v689 = vmax.f32 %v531, 0.0
        %v690 = vmax.f32 %v536, 0.0
        %v691 = vmax.f32 %v541, 0.0
        %v692 = vmax.f32 %v546, 0.0
        %v693 = vmax.f32 %v551, 0.0
        %v694 = vmax.f32 %v556, 0.0
        %v695 = vmax.f32 %v561, 0.0
        %v696 = vmax.f32 %v566, 0.0
        %v697 = vmax.f32 %v571, 0.0
        %v698 = vmax.f32 %v576, 0.0
        %v699 = vmax.f32 %v581, 0.0
        %v700 = vmax.f32 %v586, 0.0
        %v701 = vmax.f32 %v591, 0.0
        %v702 = vmax.f32 %v596, 0.0
        %v703 = vmax.f32 %v601, 0.0
        %v704 = vmax.f32 %v606, 0.0
        %v705 = vmax.f32 %v611, 0.0
        %v706 = vmax.f32 %v616, 0.0
        %v707 = vmax.f32 %v621, 0.0
        %v708 = vmax.f32 %v626, 0.0
        %v709 = vmax.f32 %v631, 0.0
        %v710 = vmax.f32 %v636, 0.0
        %v711 = vmax.f32 %v641, 0.0
        %v712 = vmax.f32 %v646, 0.0
        %v713 = vld [vmem:[#allocation5 + $0x88] sm:$0xff]
        %v714 = vld [vmem:[#allocation5 + $0x90] sm:$0xff]
        %v715 = vld [vmem:[#allocation5 + $0x98] sm:$0xff]
        %v716 = vld [vmem:[#allocation5 + $0xa0] sm:$0xff]
        %v717 = vld [vmem:[#allocation5 + $0xa8] sm:$0xff]
        %v718 = vld [vmem:[#allocation5 + $0xb0] sm:$0xff]
        %v719 = vld [vmem:[#allocation5 + $0xb8] sm:$0xff]
        %v720 = vld [vmem:[#allocation5 + $0xc0] sm:$0xff]
        %v721 = vld [vmem:[#allocation5 + $0xc8] sm:$0xff]
        %v722 = vld [vmem:[#allocation5 + $0xd0] sm:$0xff]
        %v723 = vld [vmem:[#allocation5 + $0xd8] sm:$0xff]
        %v724 = vld [vmem:[#allocation5 + $0xe0] sm:$0xff]
        %v725 = vld [vmem:[#allocation5 + $0xe8] sm:$0xff]
        %v726 = vld [vmem:[#allocation5 + $0xf0] sm:$0xff]
        %v727 = vld [vmem:[#allocation5 + $0xf8] sm:$0xff]
        %v728 = vld [vmem:[#allocation5 + $0x100] sm:$0xff]
        %v729 = vld [vmem:[#allocation5 + $0x108] sm:$0x1]
        %v730 = vlaneseq
        %v731 = vshrl.u32 %v730, 7
        %v732 = vsub.s32 0, %v731
        %v733 = vrot.slane %v729, %v732
        %734 = vmatprep.subr.mxu0 0.0
        %735 = vmatpush1.msra.mxu0 %v728
        %736 = vmatprep.subr.mxu0 0.0
        %737 = vmatpush1.msra.mxu0 %v727
        %738 = vmatprep.subr.mxu0 0.0
        %739 = vmatpush1.msra.mxu0 %v726
        %740 = vmatprep.subr.mxu0 0.0
        %741 = vmatpush1.msra.mxu0 %v725
        %742 = vmatprep.subr.mxu0 0.0
        %743 = vmatpush1.msra.mxu0 %v724
        %744 = vmatprep.subr.mxu0 0.0
        %745 = vmatpush1.msra.mxu0 %v723
        %746 = vmatprep.subr.mxu0 0.0
        %747 = vmatpush1.msra.mxu0 %v722
        %748 = vmatprep.subr.mxu0 0.0
        %749 = vmatpush1.msra.mxu0 %v721
        %750 = vmatprep.subr.mxu0 0.0
        %751 = vmatpush1.msra.mxu0 %v720
        %752 = vmatprep.subr.mxu0 0.0
        %753 = vmatpush1.msra.mxu0 %v719
        %754 = vmatprep.subr.mxu0 0.0
        %755 = vmatpush1.msra.mxu0 %v718
        %756 = vmatprep.subr.mxu0 0.0
        %757 = vmatpush1.msra.mxu0 %v717
        %758 = vmatprep.subr.mxu0 0.0
        %759 = vmatpush1.msra.mxu0 %v716
        %760 = vmatprep.subr.mxu0 0.0
        %761 = vmatpush1.msra.mxu0 %v715
        %762 = vmatprep.subr.mxu0 0.0
        %763 = vmatpush1.msra.mxu0 %v714
        %764 = vmatprep.subr.mxu0 0.0
        %765 = vmatpush1.msra.mxu0 %v713
        %766 = vmatprep.subr.mxu0 0.0
        %767 = vmatpush2.msra.mxu0 0.0
        %768 = vmatprep.subr.mxu0 0.0
        %769 = vmatpush2.msra.mxu0 0.0
        %770 = vmatprep.subr.mxu0 0.0
        %771 = vmatpush2.msra.mxu0 0.0
        %772 = vmatprep.subr.mxu0 0.0
        %773 = vmatpush2.msra.mxu0 0.0
        %774 = vmatprep.subr.mxu0 0.0
        %775 = vmatpush2.msra.mxu0 0.0
        %776 = vmatprep.subr.mxu0 0.0
        %777 = vmatpush2.msra.mxu0 0.0
        %778 = vmatprep.subr.mxu0 0.0
        %779 = vmatpush2.msra.mxu0 0.0
        %780 = vmatprep.subr.mxu0 0.0
        %781 = vmatpush2.msra.mxu0 0.0
        %782 = vmatprep.subr.mxu0 0.0
        %783 = vmatpush2.msra.mxu0 0.0
        %784 = vmatprep.subr.mxu0 0.0
        %785 = vmatpush2.msra.mxu0 0.0
        %786 = vmatprep.subr.mxu0 0.0
        %787 = vmatpush2.msra.mxu0 0.0
        %788 = vmatprep.subr.mxu0 0.0
        %789 = vmatpush2.msra.mxu0 0.0
        %790 = vmatprep.subr.mxu0 0.0
        %791 = vmatpush2.msra.mxu0 0.0
        %792 = vmatprep.subr.mxu0 0.0
        %793 = vmatpush2.msra.mxu0 0.0
        %794 = vmatprep.subr.mxu0 0.0
        %795 = vmatpush2.msra.mxu0 0.0
        %796 = vmatprep.subr.mxu0 0.0
        %797 = vmatpush2.msra.mxu0 0.0
        %798 = vmatprep.mubr.f32.mxu0 0.0
        %799 = vmatmul.mubr.f32.gmra.mxu0 %v649
        %v800 = vpop.f32.mrf.mxu0
        %v801 = vadd.f32 %v733, %v800
        %v802 = vpop.f32.mrf.mxu0
        %803 = vmatprep.mubr.f32.mxu0 0.0
        %804 = vmatmul.mubr.f32.gmra.mxu0 %v650
        %v805 = vpop.f32.mrf.mxu0
        %v806 = vadd.f32 %v733, %v805
        %v807 = vpop.f32.mrf.mxu0
        %808 = vmatprep.mubr.f32.mxu0 0.0
        %809 = vmatmul.mubr.f32.gmra.mxu0 %v651
        %v810 = vpop.f32.mrf.mxu0
        %v811 = vadd.f32 %v733, %v810
        %v812 = vpop.f32.mrf.mxu0
        %813 = vmatprep.mubr.f32.mxu0 0.0
        %814 = vmatmul.mubr.f32.gmra.mxu0 %v652
        %v815 = vpop.f32.mrf.mxu0
        %v816 = vadd.f32 %v733, %v815
        %v817 = vpop.f32.mrf.mxu0
        %818 = vmatprep.mubr.f32.mxu0 0.0
        %819 = vmatmul.mubr.f32.gmra.mxu0 %v653
        %v820 = vpop.f32.mrf.mxu0
        %v821 = vadd.f32 %v733, %v820
        %v822 = vpop.f32.mrf.mxu0
        %823 = vmatprep.mubr.f32.mxu0 0.0
        %824 = vmatmul.mubr.f32.gmra.mxu0 %v654
        %v825 = vpop.f32.mrf.mxu0
        %v826 = vadd.f32 %v733, %v825
        %v827 = vpop.f32.mrf.mxu0
        %828 = vmatprep.mubr.f32.mxu0 0.0
        %829 = vmatmul.mubr.f32.gmra.mxu0 %v655
        %v830 = vpop.f32.mrf.mxu0
        %v831 = vadd.f32 %v733, %v830
        %v832 = vpop.f32.mrf.mxu0
        %833 = vmatprep.mubr.f32.mxu0 0.0
        %834 = vmatmul.mubr.f32.gmra.mxu0 %v656
        %v835 = vpop.f32.mrf.mxu0
        %v836 = vadd.f32 %v733, %v835
        %v837 = vpop.f32.mrf.mxu0
        %838 = vmatprep.mubr.f32.mxu0 0.0
        %839 = vmatmul.mubr.f32.gmra.mxu0 %v657
        %v840 = vpop.f32.mrf.mxu0
        %v841 = vadd.f32 %v733, %v840
        %v842 = vpop.f32.mrf.mxu0
        %843 = vmatprep.mubr.f32.mxu0 0.0
        %844 = vmatmul.mubr.f32.gmra.mxu0 %v658
        %v845 = vpop.f32.mrf.mxu0
        %v846 = vadd.f32 %v733, %v845
        %v847 = vpop.f32.mrf.mxu0
        %848 = vmatprep.mubr.f32.mxu0 0.0
        %849 = vmatmul.mubr.f32.gmra.mxu0 %v659
        %v850 = vpop.f32.mrf.mxu0
        %v851 = vadd.f32 %v733, %v850
        %v852 = vpop.f32.mrf.mxu0
        %853 = vmatprep.mubr.f32.mxu0 0.0
        %854 = vmatmul.mubr.f32.gmra.mxu0 %v660
        %v855 = vpop.f32.mrf.mxu0
        %v856 = vadd.f32 %v733, %v855
        %v857 = vpop.f32.mrf.mxu0
        %858 = vmatprep.mubr.f32.mxu0 0.0
        %859 = vmatmul.mubr.f32.gmra.mxu0 %v661
        %v860 = vpop.f32.mrf.mxu0
        %v861 = vadd.f32 %v733, %v860
        %v862 = vpop.f32.mrf.mxu0
        %863 = vmatprep.mubr.f32.mxu0 0.0
        %864 = vmatmul.mubr.f32.gmra.mxu0 %v662
        %v865 = vpop.f32.mrf.mxu0
        %v866 = vadd.f32 %v733, %v865
        %v867 = vpop.f32.mrf.mxu0
        %868 = vmatprep.mubr.f32.mxu0 0.0
        %869 = vmatmul.mubr.f32.gmra.mxu0 %v663
        %v870 = vpop.f32.mrf.mxu0
        %v871 = vadd.f32 %v733, %v870
        %v872 = vpop.f32.mrf.mxu0
        %873 = vmatprep.mubr.f32.mxu0 0.0
        %874 = vmatmul.mubr.f32.gmra.mxu0 %v664
        %v875 = vpop.f32.mrf.mxu0
        %v876 = vadd.f32 %v733, %v875
        %v877 = vpop.f32.mrf.mxu0
        %878 = vmatprep.mubr.f32.mxu0 0.0
        %879 = vmatmul.mubr.f32.gmra.mxu0 %v665
        %v880 = vpop.f32.mrf.mxu0
        %v881 = vadd.f32 %v733, %v880
        %v882 = vpop.f32.mrf.mxu0
        %883 = vmatprep.mubr.f32.mxu0 0.0
        %884 = vmatmul.mubr.f32.gmra.mxu0 %v666
        %v885 = vpop.f32.mrf.mxu0
        %v886 = vadd.f32 %v733, %v885
        %v887 = vpop.f32.mrf.mxu0
        %888 = vmatprep.mubr.f32.mxu0 0.0
        %889 = vmatmul.mubr.f32.gmra.mxu0 %v667
        %v890 = vpop.f32.mrf.mxu0
        %v891 = vadd.f32 %v733, %v890
        %v892 = vpop.f32.mrf.mxu0
        %893 = vmatprep.mubr.f32.mxu0 0.0
        %894 = vmatmul.mubr.f32.gmra.mxu0 %v668
        %v895 = vpop.f32.mrf.mxu0
        %v896 = vadd.f32 %v733, %v895
        %v897 = vpop.f32.mrf.mxu0
        %898 = vmatprep.mubr.f32.mxu0 0.0
        %899 = vmatmul.mubr.f32.gmra.mxu0 %v669
        %v900 = vpop.f32.mrf.mxu0
        %v901 = vadd.f32 %v733, %v900
        %v902 = vpop.f32.mrf.mxu0
        %903 = vmatprep.mubr.f32.mxu0 0.0
        %904 = vmatmul.mubr.f32.gmra.mxu0 %v670
        %v905 = vpop.f32.mrf.mxu0
        %v906 = vadd.f32 %v733, %v905
        %v907 = vpop.f32.mrf.mxu0
        %908 = vmatprep.mubr.f32.mxu0 0.0
        %909 = vmatmul.mubr.f32.gmra.mxu0 %v671
        %v910 = vpop.f32.mrf.mxu0
        %v911 = vadd.f32 %v733, %v910
        %v912 = vpop.f32.mrf.mxu0
        %913 = vmatprep.mubr.f32.mxu0 0.0
        %914 = vmatmul.mubr.f32.gmra.mxu0 %v672
        %v915 = vpop.f32.mrf.mxu0
        %v916 = vadd.f32 %v733, %v915
        %v917 = vpop.f32.mrf.mxu0
        %918 = vmatprep.mubr.f32.mxu0 0.0
        %919 = vmatmul.mubr.f32.gmra.mxu0 %v673
        %v920 = vpop.f32.mrf.mxu0
        %v921 = vadd.f32 %v733, %v920
        %v922 = vpop.f32.mrf.mxu0
        %923 = vmatprep.mubr.f32.mxu0 0.0
        %924 = vmatmul.mubr.f32.gmra.mxu0 %v674
        %v925 = vpop.f32.mrf.mxu0
        %v926 = vadd.f32 %v733, %v925
        %v927 = vpop.f32.mrf.mxu0
        %928 = vmatprep.mubr.f32.mxu0 0.0
        %929 = vmatmul.mubr.f32.gmra.mxu0 %v675
        %v930 = vpop.f32.mrf.mxu0
        %v931 = vadd.f32 %v733, %v930
        %v932 = vpop.f32.mrf.mxu0
        %933 = vmatprep.mubr.f32.mxu0 0.0
        %934 = vmatmul.mubr.f32.gmra.mxu0 %v676
        %v935 = vpop.f32.mrf.mxu0
        %v936 = vadd.f32 %v733, %v935
        %v937 = vpop.f32.mrf.mxu0
        %938 = vmatprep.mubr.f32.mxu0 0.0
        %939 = vmatmul.mubr.f32.gmra.mxu0 %v677
        %v940 = vpop.f32.mrf.mxu0
        %v941 = vadd.f32 %v733, %v940
        %v942 = vpop.f32.mrf.mxu0
        %943 = vmatprep.mubr.f32.mxu0 0.0
        %944 = vmatmul.mubr.f32.gmra.mxu0 %v678
        %v945 = vpop.f32.mrf.mxu0
        %v946 = vadd.f32 %v733, %v945
        %v947 = vpop.f32.mrf.mxu0
        %948 = vmatprep.mubr.f32.mxu0 0.0
        %949 = vmatmul.mubr.f32.gmra.mxu0 %v679
        %v950 = vpop.f32.mrf.mxu0
        %v951 = vadd.f32 %v733, %v950
        %v952 = vpop.f32.mrf.mxu0
        %953 = vmatprep.mubr.f32.mxu0 0.0
        %954 = vmatmul.mubr.f32.gmra.mxu0 %v680
        %v955 = vpop.f32.mrf.mxu0
        %v956 = vadd.f32 %v733, %v955
        %v957 = vpop.f32.mrf.mxu0
        %958 = vmatprep.mubr.f32.mxu0 0.0
        %959 = vmatmul.mubr.f32.gmra.mxu0 %v681
        %v960 = vpop.f32.mrf.mxu0
        %v961 = vadd.f32 %v733, %v960
        %v962 = vpop.f32.mrf.mxu0
        %963 = vmatprep.mubr.f32.mxu0 0.0
        %964 = vmatmul.mubr.f32.gmra.mxu0 %v682
        %v965 = vpop.f32.mrf.mxu0
        %v966 = vadd.f32 %v733, %v965
        %v967 = vpop.f32.mrf.mxu0
        %968 = vmatprep.mubr.f32.mxu0 0.0
        %969 = vmatmul.mubr.f32.gmra.mxu0 %v683
        %v970 = vpop.f32.mrf.mxu0
        %v971 = vadd.f32 %v733, %v970
        %v972 = vpop.f32.mrf.mxu0
        %973 = vmatprep.mubr.f32.mxu0 0.0
        %974 = vmatmul.mubr.f32.gmra.mxu0 %v684
        %v975 = vpop.f32.mrf.mxu0
        %v976 = vadd.f32 %v733, %v975
        %v977 = vpop.f32.mrf.mxu0
        %978 = vmatprep.mubr.f32.mxu0 0.0
        %979 = vmatmul.mubr.f32.gmra.mxu0 %v685
        %v980 = vpop.f32.mrf.mxu0
        %v981 = vadd.f32 %v733, %v980
        %v982 = vpop.f32.mrf.mxu0
        %983 = vmatprep.mubr.f32.mxu0 0.0
        %984 = vmatmul.mubr.f32.gmra.mxu0 %v686
        %v985 = vpop.f32.mrf.mxu0
        %v986 = vadd.f32 %v733, %v985
        %v987 = vpop.f32.mrf.mxu0
        %988 = vmatprep.mubr.f32.mxu0 0.0
        %989 = vmatmul.mubr.f32.gmra.mxu0 %v687
        %v990 = vpop.f32.mrf.mxu0
        %v991 = vadd.f32 %v733, %v990
        %v992 = vpop.f32.mrf.mxu0
        %993 = vmatprep.mubr.f32.mxu0 0.0
        %994 = vmatmul.mubr.f32.gmra.mxu0 %v688
        %v995 = vpop.f32.mrf.mxu0
        %v996 = vadd.f32 %v733, %v995
        %v997 = vpop.f32.mrf.mxu0
        %998 = vmatprep.mubr.f32.mxu0 0.0
        %999 = vmatmul.mubr.f32.gmra.mxu0 %v689
        %v1000 = vpop.f32.mrf.mxu0
        %v1001 = vadd.f32 %v733, %v1000
        %v1002 = vpop.f32.mrf.mxu0
        %1003 = vmatprep.mubr.f32.mxu0 0.0
        %1004 = vmatmul.mubr.f32.gmra.mxu0 %v690
        %v1005 = vpop.f32.mrf.mxu0
        %v1006 = vadd.f32 %v733, %v1005
        %v1007 = vpop.f32.mrf.mxu0
        %1008 = vmatprep.mubr.f32.mxu0 0.0
        %1009 = vmatmul.mubr.f32.gmra.mxu0 %v691
        %v1010 = vpop.f32.mrf.mxu0
        %v1011 = vadd.f32 %v733, %v1010
        %v1012 = vpop.f32.mrf.mxu0
        %1013 = vmatprep.mubr.f32.mxu0 0.0
        %1014 = vmatmul.mubr.f32.gmra.mxu0 %v692
        %v1015 = vpop.f32.mrf.mxu0
        %v1016 = vadd.f32 %v733, %v1015
        %v1017 = vpop.f32.mrf.mxu0
        %1018 = vmatprep.mubr.f32.mxu0 0.0
        %1019 = vmatmul.mubr.f32.gmra.mxu0 %v693
        %v1020 = vpop.f32.mrf.mxu0
        %v1021 = vadd.f32 %v733, %v1020
        %v1022 = vpop.f32.mrf.mxu0
        %1023 = vmatprep.mubr.f32.mxu0 0.0
        %1024 = vmatmul.mubr.f32.gmra.mxu0 %v694
        %v1025 = vpop.f32.mrf.mxu0
        %v1026 = vadd.f32 %v733, %v1025
        %v1027 = vpop.f32.mrf.mxu0
        %1028 = vmatprep.mubr.f32.mxu0 0.0
        %1029 = vmatmul.mubr.f32.gmra.mxu0 %v695
        %v1030 = vpop.f32.mrf.mxu0
        %v1031 = vadd.f32 %v733, %v1030
        %v1032 = vpop.f32.mrf.mxu0
        %1033 = vmatprep.mubr.f32.mxu0 0.0
        %1034 = vmatmul.mubr.f32.gmra.mxu0 %v696
        %v1035 = vpop.f32.mrf.mxu0
        %v1036 = vadd.f32 %v733, %v1035
        %v1037 = vpop.f32.mrf.mxu0
        %1038 = vmatprep.mubr.f32.mxu0 0.0
        %1039 = vmatmul.mubr.f32.gmra.mxu0 %v697
        %v1040 = vpop.f32.mrf.mxu0
        %v1041 = vadd.f32 %v733, %v1040
        %v1042 = vpop.f32.mrf.mxu0
        %1043 = vmatprep.mubr.f32.mxu0 0.0
        %1044 = vmatmul.mubr.f32.gmra.mxu0 %v698
        %v1045 = vpop.f32.mrf.mxu0
        %v1046 = vadd.f32 %v733, %v1045
        %v1047 = vpop.f32.mrf.mxu0
        %1048 = vmatprep.mubr.f32.mxu0 0.0
        %1049 = vmatmul.mubr.f32.gmra.mxu0 %v699
        %v1050 = vpop.f32.mrf.mxu0
        %v1051 = vadd.f32 %v733, %v1050
        %v1052 = vpop.f32.mrf.mxu0
        %1053 = vmatprep.mubr.f32.mxu0 0.0
        %1054 = vmatmul.mubr.f32.gmra.mxu0 %v700
        %v1055 = vpop.f32.mrf.mxu0
        %v1056 = vadd.f32 %v733, %v1055
        %v1057 = vpop.f32.mrf.mxu0
        %1058 = vmatprep.mubr.f32.mxu0 0.0
        %1059 = vmatmul.mubr.f32.gmra.mxu0 %v701
        %v1060 = vpop.f32.mrf.mxu0
        %v1061 = vadd.f32 %v733, %v1060
        %v1062 = vpop.f32.mrf.mxu0
        %1063 = vmatprep.mubr.f32.mxu0 0.0
        %1064 = vmatmul.mubr.f32.gmra.mxu0 %v702
        %v1065 = vpop.f32.mrf.mxu0
        %v1066 = vadd.f32 %v733, %v1065
        %v1067 = vpop.f32.mrf.mxu0
        %1068 = vmatprep.mubr.f32.mxu0 0.0
        %1069 = vmatmul.mubr.f32.gmra.mxu0 %v703
        %v1070 = vpop.f32.mrf.mxu0
        %v1071 = vadd.f32 %v733, %v1070
        %v1072 = vpop.f32.mrf.mxu0
        %1073 = vmatprep.mubr.f32.mxu0 0.0
        %1074 = vmatmul.mubr.f32.gmra.mxu0 %v704
        %v1075 = vpop.f32.mrf.mxu0
        %v1076 = vadd.f32 %v733, %v1075
        %v1077 = vpop.f32.mrf.mxu0
        %1078 = vmatprep.mubr.f32.mxu0 0.0
        %1079 = vmatmul.mubr.f32.gmra.mxu0 %v705
        %v1080 = vpop.f32.mrf.mxu0
        %v1081 = vadd.f32 %v733, %v1080
        %v1082 = vpop.f32.mrf.mxu0
        %1083 = vmatprep.mubr.f32.mxu0 0.0
        %1084 = vmatmul.mubr.f32.gmra.mxu0 %v706
        %v1085 = vpop.f32.mrf.mxu0
        %v1086 = vadd.f32 %v733, %v1085
        %v1087 = vpop.f32.mrf.mxu0
        %1088 = vmatprep.mubr.f32.mxu0 0.0
        %1089 = vmatmul.mubr.f32.gmra.mxu0 %v707
        %v1090 = vpop.f32.mrf.mxu0
        %v1091 = vadd.f32 %v733, %v1090
        %v1092 = vpop.f32.mrf.mxu0
        %1093 = vmatprep.mubr.f32.mxu0 0.0
        %1094 = vmatmul.mubr.f32.gmra.mxu0 %v708
        %v1095 = vpop.f32.mrf.mxu0
        %v1096 = vadd.f32 %v733, %v1095
        %v1097 = vpop.f32.mrf.mxu0
        %1098 = vmatprep.mubr.f32.mxu0 0.0
        %1099 = vmatmul.mubr.f32.gmra.mxu0 %v709
        %v1100 = vpop.f32.mrf.mxu0
        %v1101 = vadd.f32 %v733, %v1100
        %v1102 = vpop.f32.mrf.mxu0
        %1103 = vmatprep.mubr.f32.mxu0 0.0
        %1104 = vmatmul.mubr.f32.gmra.mxu0 %v710
        %v1105 = vpop.f32.mrf.mxu0
        %v1106 = vadd.f32 %v733, %v1105
        %v1107 = vpop.f32.mrf.mxu0
        %1108 = vmatprep.mubr.f32.mxu0 0.0
        %1109 = vmatmul.mubr.f32.gmra.mxu0 %v711
        %v1110 = vpop.f32.mrf.mxu0
        %v1111 = vadd.f32 %v733, %v1110
        %v1112 = vpop.f32.mrf.mxu0
        %1113 = vmatprep.mubr.f32.mxu0 0.0
        %1114 = vmatmul.mubr.f32.gmra.mxu0 %v712
        %v1115 = vpop.f32.mrf.mxu0
        %v1116 = vadd.f32 %v733, %v1115
        %v1117 = vpop.f32.mrf.mxu0
        %1118 = vdwg.mxu0
        %v1119 = vmax.f32 %v801, 0.0
        %v1120 = vmax.f32 %v806, 0.0
        %v1121 = vmax.f32 %v811, 0.0
        %v1122 = vmax.f32 %v816, 0.0
        %v1123 = vmax.f32 %v821, 0.0
        %v1124 = vmax.f32 %v826, 0.0
        %v1125 = vmax.f32 %v831, 0.0
        %v1126 = vmax.f32 %v836, 0.0
        %v1127 = vmax.f32 %v841, 0.0
        %v1128 = vmax.f32 %v846, 0.0
        %v1129 = vmax.f32 %v851, 0.0
        %v1130 = vmax.f32 %v856, 0.0
        %v1131 = vmax.f32 %v861, 0.0
        %v1132 = vmax.f32 %v866, 0.0
        %v1133 = vmax.f32 %v871, 0.0
        %v1134 = vmax.f32 %v876, 0.0
        %v1135 = vmax.f32 %v881, 0.0
        %v1136 = vmax.f32 %v886, 0.0
        %v1137 = vmax.f32 %v891, 0.0
        %v1138 = vmax.f32 %v896, 0.0
        %v1139 = vmax.f32 %v901, 0.0
        %v1140 = vmax.f32 %v906, 0.0
        %v1141 = vmax.f32 %v911, 0.0
        %v1142 = vmax.f32 %v916, 0.0
        %v1143 = vmax.f32 %v921, 0.0
        %v1144 = vmax.f32 %v926, 0.0
        %v1145 = vmax.f32 %v931, 0.0
        %v1146 = vmax.f32 %v936, 0.0
        %v1147 = vmax.f32 %v941, 0.0
        %v1148 = vmax.f32 %v946, 0.0
        %v1149 = vmax.f32 %v951, 0.0
        %v1150 = vmax.f32 %v956, 0.0
        %v1151 = vmax.f32 %v961, 0.0
        %v1152 = vmax.f32 %v966, 0.0
        %v1153 = vmax.f32 %v971, 0.0
        %v1154 = vmax.f32 %v976, 0.0
        %v1155 = vmax.f32 %v981, 0.0
        %v1156 = vmax.f32 %v986, 0.0
        %v1157 = vmax.f32 %v991, 0.0
        %v1158 = vmax.f32 %v996, 0.0
        %v1159 = vmax.f32 %v1001, 0.0
        %v1160 = vmax.f32 %v1006, 0.0
        %v1161 = vmax.f32 %v1011, 0.0
        %v1162 = vmax.f32 %v1016, 0.0
        %v1163 = vmax.f32 %v1021, 0.0
        %v1164 = vmax.f32 %v1026, 0.0
        %v1165 = vmax.f32 %v1031, 0.0
        %v1166 = vmax.f32 %v1036, 0.0
        %v1167 = vmax.f32 %v1041, 0.0
        %v1168 = vmax.f32 %v1046, 0.0
        %v1169 = vmax.f32 %v1051, 0.0
        %v1170 = vmax.f32 %v1056, 0.0
        %v1171 = vmax.f32 %v1061, 0.0
        %v1172 = vmax.f32 %v1066, 0.0
        %v1173 = vmax.f32 %v1071, 0.0
        %v1174 = vmax.f32 %v1076, 0.0
        %v1175 = vmax.f32 %v1081, 0.0
        %v1176 = vmax.f32 %v1086, 0.0
        %v1177 = vmax.f32 %v1091, 0.0
        %v1178 = vmax.f32 %v1096, 0.0
        %v1179 = vmax.f32 %v1101, 0.0
        %v1180 = vmax.f32 %v1106, 0.0
        %v1181 = vmax.f32 %v1111, 0.0
        %v1182 = vmax.f32 %v1116, 0.0
        %v1183 = vld [vmem:[#allocation5 + $0x110] sm:$0x1]
        %v1184 = vld [vmem:[#allocation5 + $0x118] sm:$0x1]
        %1186 = vset.pattern.permute.xlu0 0
        %1187 = vperm.xlu0 %1186, %v1184
        %v1188 = vpop.permute.xlu0 %1187
        %1190 = vmatprep.subr.mxu0 0.0
        %1191 = vmatpush1.xpose.msra.mxu0 %v1134
        %1192 = vmatprep.subr.mxu0 0.0
        %1193 = vmatpush1.xpose.msra.mxu0 %v1133
        %1194 = vmatprep.subr.mxu0 0.0
        %1195 = vmatpush1.xpose.msra.mxu0 %v1132
        %1196 = vmatprep.subr.mxu0 0.0
        %1197 = vmatpush1.xpose.msra.mxu0 %v1131
        %1198 = vmatprep.subr.mxu0 0.0
        %1199 = vmatpush1.xpose.msra.mxu0 %v1130
        %1200 = vmatprep.subr.mxu0 0.0
        %1201 = vmatpush1.xpose.msra.mxu0 %v1129
        %1202 = vmatprep.subr.mxu0 0.0
        %1203 = vmatpush1.xpose.msra.mxu0 %v1128
        %1204 = vmatprep.subr.mxu0 0.0
        %1205 = vmatpush1.xpose.msra.mxu0 %v1127
        %1206 = vmatprep.subr.mxu0 0.0
        %1207 = vmatpush1.xpose.msra.mxu0 %v1126
        %1208 = vmatprep.subr.mxu0 0.0
        %1209 = vmatpush1.xpose.msra.mxu0 %v1125
        %1210 = vmatprep.subr.mxu0 0.0
        %1211 = vmatpush1.xpose.msra.mxu0 %v1124
        %1212 = vmatprep.subr.mxu0 0.0
        %1213 = vmatpush1.xpose.msra.mxu0 %v1123
        %1214 = vmatprep.subr.mxu0 0.0
        %1215 = vmatpush1.xpose.msra.mxu0 %v1122
        %1216 = vmatprep.subr.mxu0 0.0
        %1217 = vmatpush1.xpose.msra.mxu0 %v1121
        %1218 = vmatprep.subr.mxu0 0.0
        %1219 = vmatpush1.xpose.msra.mxu0 %v1120
        %1220 = vmatprep.subr.mxu0 0.0
        %1221 = vmatpush1.xpose.msra.mxu0 %v1119
        %1222 = vmatprep.subr.mxu0 0.0
        %1223 = vmatpush2.xpose.msra.mxu0 %v1150
        %1224 = vmatprep.subr.mxu0 0.0
        %1225 = vmatpush2.xpose.msra.mxu0 %v1149
        %1226 = vmatprep.subr.mxu0 0.0
        %1227 = vmatpush2.xpose.msra.mxu0 %v1148
        %1228 = vmatprep.subr.mxu0 0.0
        %1229 = vmatpush2.xpose.msra.mxu0 %v1147
        %1230 = vmatprep.subr.mxu0 0.0
        %1231 = vmatpush2.xpose.msra.mxu0 %v1146
        %1232 = vmatprep.subr.mxu0 0.0
        %1233 = vmatpush2.xpose.msra.mxu0 %v1145
        %1234 = vmatprep.subr.mxu0 0.0
        %1235 = vmatpush2.xpose.msra.mxu0 %v1144
        %1236 = vmatprep.subr.mxu0 0.0
        %1237 = vmatpush2.xpose.msra.mxu0 %v1143
        %1238 = vmatprep.subr.mxu0 0.0
        %1239 = vmatpush2.xpose.msra.mxu0 %v1142
        %1240 = vmatprep.subr.mxu0 0.0
        %1241 = vmatpush2.xpose.msra.mxu0 %v1141
        %1242 = vmatprep.subr.mxu0 0.0
        %1243 = vmatpush2.xpose.msra.mxu0 %v1140
        %1244 = vmatprep.subr.mxu0 0.0
        %1245 = vmatpush2.xpose.msra.mxu0 %v1139
        %1246 = vmatprep.subr.mxu0 0.0
        %1247 = vmatpush2.xpose.msra.mxu0 %v1138
        %1248 = vmatprep.subr.mxu0 0.0
        %1249 = vmatpush2.xpose.msra.mxu0 %v1137
        %1250 = vmatprep.subr.mxu0 0.0
        %1251 = vmatpush2.xpose.msra.mxu0 %v1136
        %1252 = vmatprep.subr.mxu0 0.0
        %1253 = vmatpush2.xpose.msra.mxu0 %v1135
        %1254 = vmatprep.mubr.f32.mxu0 0.0
        %1255 = vmatmul.mubr.f32.gmra.mxu0 %v1183
        %v1256 = vpop.f32.mrf.mxu0
        %v1257 = vadd.f32 %v1188, %v1256
        %v1258 = vpop.f32.mrf.mxu0
        %v1259 = vadd.f32 %v1188, %v1258
        %1260 = vdwg.mxu0
        %1261 = vmatprep.subr.mxu0 0.0
        %1262 = vmatpush1.xpose.msra.mxu0 %v1166
        %1263 = vmatprep.subr.mxu0 0.0
        %1264 = vmatpush1.xpose.msra.mxu0 %v1165
        %1265 = vmatprep.subr.mxu0 0.0
        %1266 = vmatpush1.xpose.msra.mxu0 %v1164
        %1267 = vmatprep.subr.mxu0 0.0
        %1268 = vmatpush1.xpose.msra.mxu0 %v1163
        %1269 = vmatprep.subr.mxu0 0.0
        %1270 = vmatpush1.xpose.msra.mxu0 %v1162
        %1271 = vmatprep.subr.mxu0 0.0
        %1272 = vmatpush1.xpose.msra.mxu0 %v1161
        %1273 = vmatprep.subr.mxu0 0.0
        %1274 = vmatpush1.xpose.msra.mxu0 %v1160
        %1275 = vmatprep.subr.mxu0 0.0
        %1276 = vmatpush1.xpose.msra.mxu0 %v1159
        %1277 = vmatprep.subr.mxu0 0.0
        %1278 = vmatpush1.xpose.msra.mxu0 %v1158
        %1279 = vmatprep.subr.mxu0 0.0
        %1280 = vmatpush1.xpose.msra.mxu0 %v1157
        %1281 = vmatprep.subr.mxu0 0.0
        %1282 = vmatpush1.xpose.msra.mxu0 %v1156
        %1283 = vmatprep.subr.mxu0 0.0
        %1284 = vmatpush1.xpose.msra.mxu0 %v1155
        %1285 = vmatprep.subr.mxu0 0.0
        %1286 = vmatpush1.xpose.msra.mxu0 %v1154
        %1287 = vmatprep.subr.mxu0 0.0
        %1288 = vmatpush1.xpose.msra.mxu0 %v1153
        %1289 = vmatprep.subr.mxu0 0.0
        %1290 = vmatpush1.xpose.msra.mxu0 %v1152
        %1291 = vmatprep.subr.mxu0 0.0
        %1292 = vmatpush1.xpose.msra.mxu0 %v1151
        %1293 = vmatprep.subr.mxu0 0.0
        %1294 = vmatpush2.xpose.msra.mxu0 %v1182
        %1295 = vmatprep.subr.mxu0 0.0
        %1296 = vmatpush2.xpose.msra.mxu0 %v1181
        %1297 = vmatprep.subr.mxu0 0.0
        %1298 = vmatpush2.xpose.msra.mxu0 %v1180
        %1299 = vmatprep.subr.mxu0 0.0
        %1300 = vmatpush2.xpose.msra.mxu0 %v1179
        %1301 = vmatprep.subr.mxu0 0.0
        %1302 = vmatpush2.xpose.msra.mxu0 %v1178
        %1303 = vmatprep.subr.mxu0 0.0
        %1304 = vmatpush2.xpose.msra.mxu0 %v1177
        %1305 = vmatprep.subr.mxu0 0.0
        %1306 = vmatpush2.xpose.msra.mxu0 %v1176
        %1307 = vmatprep.subr.mxu0 0.0
        %1308 = vmatpush2.xpose.msra.mxu0 %v1175
        %1309 = vmatprep.subr.mxu0 0.0
        %1310 = vmatpush2.xpose.msra.mxu0 %v1174
        %1311 = vmatprep.subr.mxu0 0.0
        %1312 = vmatpush2.xpose.msra.mxu0 %v1173
        %1313 = vmatprep.subr.mxu0 0.0
        %1314 = vmatpush2.xpose.msra.mxu0 %v1172
        %1315 = vmatprep.subr.mxu0 0.0
        %1316 = vmatpush2.xpose.msra.mxu0 %v1171
        %1317 = vmatprep.subr.mxu0 0.0
        %1318 = vmatpush2.xpose.msra.mxu0 %v1170
        %1319 = vmatprep.subr.mxu0 0.0
        %1320 = vmatpush2.xpose.msra.mxu0 %v1169
        %1321 = vmatprep.subr.mxu0 0.0
        %1322 = vmatpush2.xpose.msra.mxu0 %v1168
        %1323 = vmatprep.subr.mxu0 0.0
        %1324 = vmatpush2.xpose.msra.mxu0 %v1167
        %1325 = vmatprep.mubr.f32.mxu0 0.0
        %1326 = vmatmul.mubr.f32.gmra.mxu0 %v1183
        %v1327 = vpop.f32.mrf.mxu0
        %v1328 = vadd.f32 %v1188, %v1327
        %v1329 = vpop.f32.mrf.mxu0
        %v1330 = vadd.f32 %v1188, %v1329
        %1331 = vdwg.mxu0
        %v1336 = vcombine.low %v1257, %v1259
        %v1337 = vcombine.low %v1328, %v1330
        %v1339 = vunpack.c.l.s4 1966171168
        %v1340 = vunpack.c.0.s8 %v1339
        %v1341 = vlaneseq
        %v1342 = vshrl.u32 %v1341, 7
        %v1343 = vsub.s32 %v1340, %v1342
        %v1344 = vrot.slane %v1336, %v1343
        %v1346 = vunpack.c.l.s4 1966171168
        %v1347 = vunpack.c.0.s8 %v1346
        %v1348 = vlaneseq
        %v1349 = vshrl.u32 %v1348, 7
        %v1350 = vsub.s32 %v1347, %v1349
        %v1351 = vrot.slane %v1337, %v1350
        %v1352 = vcombine.low %v1344, %v1351
        %v1354 = vunpack.c.l.s4 1966171168
        %v1355 = vunpack.c.0.s8 %v1354
        %v1356 = vlaneseq
        %v1357 = vshrl.u32 %v1356, 7
        %v1358 = vsub.s32 %v1355, %v1357
        %v1359 = vrot.slane %v1352, %v1358
        %v1361 = vlaneseq
        %vm1362 = vcmp.ge.s32.totalorder %v1361, 0
        %vm1363 = vcmp.lt.s32.totalorder %v1361, 512
        %vm1364 = vmand %vm1362, %vm1363
        %1365 = vst.msk [vmem:[%s176] sm:$0xf] %vm1364, %v1359
        %s1366 = sand.u32 %s75, 1
        %s1367 = scalar_lea.sflag [#allocation4], %s1366
        %s1368 = sand.u32 %s75, 1
        %s1369 = smul.addr %s1368, 4
        %s1370 = scalar_lea.vmem [#allocation7], %s1369
        // Predicated region
        $region37: #{tpu_custom_call.1} parent=27 // pred_check
          %p1371 = pneg %p85
        $region38: #{tpu_custom_call.1} parent=27 // pred_check_branch
          %1373 = sbr.rel (%p1371) target = $region40
        $region39: #{tpu_custom_call.1} parent=27 // pred_region
          %s1374 = smul.u32 4, %s20
          %s1376 = ssub.s32 64, 64
          %1377 = vsyncadd %s1367, %s1376
          %s1378 = smul.addr %s1374, 16
          %s1379 = scalar_lea.hbm %s2, %s1378
          %s1381 = sshll.u32 %s1370, 4
          %s1382 = int_to_ptr.vmem [resolvable:$true] %s1381
          %1384 = dma.vmem_to_hbm [thread:$0]  %s1382, 64, %s1379, %s1367
        $region40: #{tpu_custom_call.1} parent=27 // pred_fallthru
          _
      $region28: #{tpu_custom_call.1} parent=5 // pred_fallthru
        _
      %p1385 = scmp.le.s32.totalorder 2, %s15
      // Predicated region
      $region41: #{tpu_custom_call.1} parent=5 // pred_check
        %p1386 = pneg %p1385
      $region42: #{tpu_custom_call.1} parent=5 // pred_check_branch
        %1388 = sbr.rel (%p1386) target = $region44
      $region43: #{tpu_custom_call.1} parent=5 // pred_region
        %s1389 = ssub.s32 %s15, 2
        // Predicated region
        $region45: #{tpu_custom_call.1} parent=43 // pred_check
          %p1390 = pneg %p91
        $region46: #{tpu_custom_call.1} parent=43 // pred_check_branch
          %1392 = sbr.rel (%p1390) target = $region48
        $region47: #{tpu_custom_call.1} parent=43 // pred_region
          %s1393 = sand.u32 %s76, 1
          %s1394 = scalar_lea.sflag [#allocation4], %s1393
          %s1395 = sand.u32 %s76, 1
          %s1396 = smul.addr %s1395, 4
          %s1397 = scalar_lea.vmem [#allocation7], %s1396
          %1398 = dma.done %s1394, 64
        $region48: #{tpu_custom_call.1} parent=43 // pred_fallthru
          _
      $region44: #{tpu_custom_call.1} parent=5 // pred_fallthru
        _
    $region6: #{tpu_custom_call.1} parent=1 // loop_footer
      %s19 = sadd.s32 1, %s15
    $region7: #{tpu_custom_call.1} parent=1 // loop_footer_branch
      %14 = sbr.rel target = $region3
    $region8: #{tpu_custom_call.1} parent=1 // loop_exit
      _
    %1399 = vsyncpa [#allocation3], 1
    %s1400 = scalar_lea.sflag [#allocation3], 1
    %1401 = vsyncpa %s1400, 1
    %1402 = vsyncpa [#allocation6], 1
    %1403 = vsyncpa [#allocation4], 1
    %s1404 = scalar_lea.sflag [#allocation4], 1
    %1405 = vsyncpa %s1404, 1

</llo_original>
